<compile_context>
chip_gen: v7x
topology: tpu7x:2x2x1
jax: 0.10.0
libtpu: 0.0.40
codegen_flags: <defaults>
</compile_context>

<pallas_src>
import functools
import math

import jax
import jax.numpy as jnp
from jax.experimental import pallas as pl
from jax.experimental.pallas import tpu as pltpu


def _textcnn_kernel(*refs, ks):
    """One grid step = one batch row. refs = (emb, w3, b3, w4, b4, w5, b5, out)."""
    emb_ref = refs[0]
    out_ref = refs[-1]
    L = emb_ref.shape[1]
    emb = emb_ref[0]                                   # (L, E), loaded once
    for idx, k in enumerate(ks):
        w_ref = refs[1 + 2 * idx]                      # (k, E, Cp), VMEM-resident
        b_ref = refs[2 + 2 * idx]                      # (1, Cp)
        T = L - k + 1
        Cp = w_ref.shape[-1]
        acc = jnp.zeros((T, Cp), jnp.float32)
        for dk in range(k):                            # k static matmuls on the MXU
            acc += jnp.dot(emb[dk:dk + T, :], w_ref[dk],
                           preferred_element_type=jnp.float32)
        acc = acc + b_ref[...]                         # broadcast bias (1, Cp)
        pooled = jnp.max(jnp.maximum(acc, 0.0), axis=0)  # ReLU + global max-pool
        out_ref[0, idx, :] = pooled.astype(out_ref.dtype)


def textcnn_fe_forward(text, emb_table, conv_weights, conv_biases):
    """Pallas forward of TextCNN_FE.

    text         : (B, L) int32 token ids
    emb_table    : (V, E) float32
    conv_weights : list of (k, E, C) float32  (torch Conv2d weight (C,1,k,E) -> (k,E,C))
    conv_biases  : list of (C,) float32
    returns      : (B, len(ks)*C) float32, channel order [k=3 | k=4 | k=5]
    """
    B, L = text.shape
    V, E = emb_table.shape
    C = conv_weights[0].shape[-1]
    ks = tuple(int(w.shape[0]) for w in conv_weights)

    # TODO(synk): embedding gather is done with an XLA take(); a Pallas
    # scalar-prefetch pl.Element row-gather is possible but is one tiny (1, E)
    # DMA per token and is not worthwhile at this scale.
    emb = jnp.take(emb_table, text, axis=0).astype(jnp.float32)      # (B, L, E)

    # Lane-dense channels: pad C=100 -> Cp=128 (multiple of 128).
    Cp = ((C + 127) // 128) * 128
    w_pad = [jnp.pad(w, ((0, 0), (0, 0), (0, Cp - C))) for w in conv_weights]
    b_pad = [jnp.pad(b, (0, Cp - C)).reshape(1, Cp) for b in conv_biases]

    in_specs = [pl.BlockSpec((1, L, E), lambda b: (b, 0, 0))]
    operands = [emb]
    for w, bb in zip(w_pad, b_pad):
        in_specs.append(pl.BlockSpec(w.shape, lambda b: (0, 0, 0)))  # weights stay resident
        in_specs.append(pl.BlockSpec((1, Cp), lambda b: (0, 0)))
        operands.extend([w, bb])

    flops = 2 * B * sum((L - k + 1) * k * E * Cp for k in ks)
    bytes_accessed = 4 * (emb.size + sum(w.size for w in w_pad)
                          + sum(b.size for b in b_pad) + B * len(ks) * Cp)

    out = pl.pallas_call(
        functools.partial(_textcnn_kernel, ks=ks),
        out_shape=jax.ShapeDtypeStruct((B, len(ks), Cp), jnp.float32),
        grid_spec=pltpu.PrefetchScalarGridSpec(
            num_scalar_prefetch=0,
            grid=(B,),                                  # batch rows are independent
            in_specs=in_specs,
            out_specs=pl.BlockSpec((1, len(ks), Cp), lambda b: (b, 0, 0)),
        ),
        compiler_params=pltpu.CompilerParams(
            dimension_semantics=("parallel",),          # megacore-shard batch on v7x
        ),
        cost_estimate=pl.CostEstimate(
            flops=flops, transcendentals=0, bytes_accessed=bytes_accessed),
    )(*operands)

    # Drop the channel pad and flatten to the torch.cat(..., dim=1) layout.
    return out[:, :, :C].reshape(B, len(ks) * C)


def init_params(key, vocab_size, emb_size, n_channels=100, kernel_sizes=(3, 4, 5)):
    """Mirrors the PyTorch module init: embedding U(-0.1, 0.1); Conv2d default U(+-1/sqrt(fan_in))."""
    keys = jax.random.split(key, 1 + 2 * len(kernel_sizes))
    emb_table = jax.random.uniform(keys[0], (vocab_size, emb_size),
                                   minval=-0.1, maxval=0.1, dtype=jnp.float32)
    weights, biases = [], []
    for i, k in enumerate(kernel_sizes):
        stdv = 1.0 / math.sqrt(k * emb_size)
        weights.append(jax.random.uniform(keys[1 + 2 * i], (k, emb_size, n_channels),
                                          minval=-stdv, maxval=stdv, dtype=jnp.float32))
        biases.append(jax.random.uniform(keys[2 + 2 * i], (n_channels,),
                                         minval=-stdv, maxval=stdv, dtype=jnp.float32))
    return emb_table, weights, biases


def reference_forward(text, emb_table, conv_weights, conv_biases):
    """Pure-JAX reference of TextCNN_FE.forward (conv expressed as shifted matmuls)."""
    emb = jnp.take(emb_table, text, axis=0)             # (B, L, E)
    B, L, _ = emb.shape
    pools = []
    for w, bias in zip(conv_weights, conv_biases):
        k, _, C = w.shape
        T = L - k + 1
        conv = jnp.zeros((B, T, C), jnp.float32)
        for dk in range(k):
            conv = conv + jnp.einsum('ble,ec->blc', emb[:, dk:dk + T, :], w[dk])
        conv = jax.nn.relu(conv + bias)
        pools.append(jnp.max(conv, axis=1))
    return jnp.concatenate(pools, axis=1)               # (B, 3*C)


if __name__ == "__main__":
    key = jax.random.PRNGKey(0)
    k_ids, k_params = jax.random.split(key)

    vocab_size, emb_size = 97, 32
    B, L = 2, 16

    emb_table, conv_w, conv_b = init_params(k_params, vocab_size, emb_size)
    text = jax.random.randint(k_ids, (B, L), 0, vocab_size, dtype=jnp.int32)

    out = textcnn_fe_forward(text, emb_table, conv_w, conv_b)
    jax.block_until_ready(out)

    ref = reference_forward(text, emb_table, conv_w, conv_b)
    assert out.shape == (B, 300), out.shape
    assert jnp.allclose(out, ref, atol=1e-4, rtol=1e-4), float(jnp.max(jnp.abs(out - ref)))

    print("KERNEL_OK")
</pallas_src>

<mosaic_0001>
module attributes {stable_mosaic.version = 11 : i64} {
  func.func @_textcnn_kernel(%arg0: i32, %arg1: memref<1x16x32xf32, #tpu.memory_space<vmem>>, %arg2: memref<3x32x128xf32, #tpu.memory_space<vmem>>, %arg3: memref<1x128xf32, #tpu.memory_space<vmem>>, %arg4: memref<4x32x128xf32, #tpu.memory_space<vmem>>, %arg5: memref<1x128xf32, #tpu.memory_space<vmem>>, %arg6: memref<5x32x128xf32, #tpu.memory_space<vmem>>, %arg7: memref<1x128xf32, #tpu.memory_space<vmem>>, %arg8: memref<1x3x128xf32, #tpu.memory_space<vmem>>) attributes {dimension_semantics = [#tpu.dimension_semantics<parallel>], iteration_bounds = array<i64: 2>, scalar_prefetch = 0 : i64, scratch_operands = 0 : i64, tpu.core_type = #tpu.core_type<tc>, window_params = [{transform_indices = @transform_0, window_bounds = array<i64: 1, 16, 32>}, {pipeline_mode = #tpu.pipeline_mode<synchronous>, transform_indices = @transform_1, window_bounds = array<i64: 3, 32, 128>}, {pipeline_mode = #tpu.pipeline_mode<synchronous>, transform_indices = @transform_2, window_bounds = array<i64: 1, 128>}, {pipeline_mode = #tpu.pipeline_mode<synchronous>, transform_indices = @transform_3, window_bounds = array<i64: 4, 32, 128>}, {pipeline_mode = #tpu.pipeline_mode<synchronous>, transform_indices = @transform_4, window_bounds = array<i64: 1, 128>}, {pipeline_mode = #tpu.pipeline_mode<synchronous>, transform_indices = @transform_5, window_bounds = array<i64: 5, 32, 128>}, {pipeline_mode = #tpu.pipeline_mode<synchronous>, transform_indices = @transform_6, window_bounds = array<i64: 1, 128>}, {transform_indices = @transform_7, window_bounds = array<i64: 1, 3, 128>}]} {
    %c0 = arith.constant 0 : index
    %c0_0 = arith.constant 0 : index
    %c0_1 = arith.constant 0 : index
    %0 = vector.load %arg1[%c0, %c0_0, %c0_1] : memref<1x16x32xf32, #tpu.memory_space<vmem>>, vector<1x16x32xf32>
    %1 = vector.shape_cast %0 : vector<1x16x32xf32> to vector<16x32xf32>
    %cst = arith.constant 0.000000e+00 : f32
    %2 = vector.broadcast %cst : f32 to vector<14x128xf32>
    %3 = vector.extract_strided_slice %1 {offsets = [0, 0], sizes = [14, 32], strides = [1, 1]} : vector<16x32xf32> to vector<14x32xf32>
    %c0_2 = arith.constant 0 : index
    %c0_3 = arith.constant 0 : index
    %c0_4 = arith.constant 0 : index
    %4 = vector.load %arg2[%c0_2, %c0_3, %c0_4] : memref<3x32x128xf32, #tpu.memory_space<vmem>>, vector<1x32x128xf32>
    %5 = vector.shape_cast %4 : vector<1x32x128xf32> to vector<32x128xf32>
    %cst_5 = arith.constant dense<0.000000e+00> : vector<14x128xf32>
    %6 = tpu.matmul %3, %5, %cst_5 {dimension_numbers = #tpu.dot_dimension_numbers<[1], [0], [0], [1], [0, 0, 1, 1], [], []>} : vector<14x32xf32>, vector<32x128xf32>, vector<14x128xf32> -> vector<14x128xf32>
    %7 = arith.addf %2, %6 : vector<14x128xf32>
    %8 = vector.extract_strided_slice %1 {offsets = [1, 0], sizes = [14, 32], strides = [1, 1]} : vector<16x32xf32> to vector<14x32xf32>
    %c1 = arith.constant 1 : index
    %c0_6 = arith.constant 0 : index
    %c0_7 = arith.constant 0 : index
    %9 = vector.load %arg2[%c1, %c0_6, %c0_7] : memref<3x32x128xf32, #tpu.memory_space<vmem>>, vector<1x32x128xf32>
    %10 = vector.shape_cast %9 : vector<1x32x128xf32> to vector<32x128xf32>
    %cst_8 = arith.constant dense<0.000000e+00> : vector<14x128xf32>
    %11 = tpu.matmul %8, %10, %cst_8 {dimension_numbers = #tpu.dot_dimension_numbers<[1], [0], [0], [1], [0, 0, 1, 1], [], []>} : vector<14x32xf32>, vector<32x128xf32>, vector<14x128xf32> -> vector<14x128xf32>
    %12 = arith.addf %7, %11 : vector<14x128xf32>
    %13 = vector.extract_strided_slice %1 {offsets = [2, 0], sizes = [14, 32], strides = [1, 1]} : vector<16x32xf32> to vector<14x32xf32>
    %c2 = arith.constant 2 : index
    %c0_9 = arith.constant 0 : index
    %c0_10 = arith.constant 0 : index
    %14 = vector.load %arg2[%c2, %c0_9, %c0_10] : memref<3x32x128xf32, #tpu.memory_space<vmem>>, vector<1x32x128xf32>
    %15 = vector.shape_cast %14 : vector<1x32x128xf32> to vector<32x128xf32>
    %cst_11 = arith.constant dense<0.000000e+00> : vector<14x128xf32>
    %16 = tpu.matmul %13, %15, %cst_11 {dimension_numbers = #tpu.dot_dimension_numbers<[1], [0], [0], [1], [0, 0, 1, 1], [], []>} : vector<14x32xf32>, vector<32x128xf32>, vector<14x128xf32> -> vector<14x128xf32>
    %17 = arith.addf %12, %16 : vector<14x128xf32>
    %c0_12 = arith.constant 0 : index
    %c0_13 = arith.constant 0 : index
    %18 = vector.load %arg3[%c0_12, %c0_13] : memref<1x128xf32, #tpu.memory_space<vmem>>, vector<1x128xf32>
    %19 = vector.broadcast %18 : vector<1x128xf32> to vector<14x128xf32>
    %20 = arith.addf %17, %19 : vector<14x128xf32>
    %cst_14 = arith.constant 0.000000e+00 : f32
    %21 = vector.broadcast %cst_14 : f32 to vector<14x128xf32>
    %22 = arith.maximumf %20, %21 : vector<14x128xf32>
    %cst_15 = arith.constant dense<0xFF800000> : vector<128xf32>
    %23 = vector.multi_reduction <maximumf>, %22, %cst_15 [0] : vector<14x128xf32> to vector<128xf32>
    %c0_16 = arith.constant 0 : index
    %c0_17 = arith.constant 0 : index
    %c0_18 = arith.constant 0 : index
    %24 = vector.load %arg8[%c0_16, %c0_17, %c0_18] : memref<1x3x128xf32, #tpu.memory_space<vmem>>, vector<1x1x128xf32>
    %25 = vector.shape_cast %24 : vector<1x1x128xf32> to vector<128xf32>
    %26 = vector.shape_cast %23 : vector<128xf32> to vector<1x1x128xf32>
    tpu.vector_store %arg8[%c0_16, %c0_17, %c0_18], %26 {strides = array<i32>} : memref<1x3x128xf32, #tpu.memory_space<vmem>>, vector<1x1x128xf32>,
    %cst_19 = arith.constant 0.000000e+00 : f32
    %27 = vector.broadcast %cst_19 : f32 to vector<13x128xf32>
    %28 = vector.extract_strided_slice %1 {offsets = [0, 0], sizes = [13, 32], strides = [1, 1]} : vector<16x32xf32> to vector<13x32xf32>
    %c0_20 = arith.constant 0 : index
    %c0_21 = arith.constant 0 : index
    %c0_22 = arith.constant 0 : index
    %29 = vector.load %arg4[%c0_20, %c0_21, %c0_22] : memref<4x32x128xf32, #tpu.memory_space<vmem>>, vector<1x32x128xf32>
    %30 = vector.shape_cast %29 : vector<1x32x128xf32> to vector<32x128xf32>
    %cst_23 = arith.constant dense<0.000000e+00> : vector<13x128xf32>
    %31 = tpu.matmul %28, %30, %cst_23 {dimension_numbers = #tpu.dot_dimension_numbers<[1], [0], [0], [1], [0, 0, 1, 1], [], []>} : vector<13x32xf32>, vector<32x128xf32>, vector<13x128xf32> -> vector<13x128xf32>
    %32 = arith.addf %27, %31 : vector<13x128xf32>
    %33 = vector.extract_strided_slice %1 {offsets = [1, 0], sizes = [13, 32], strides = [1, 1]} : vector<16x32xf32> to vector<13x32xf32>
    %c1_24 = arith.constant 1 : index
    %c0_25 = arith.constant 0 : index
    %c0_26 = arith.constant 0 : index
    %34 = vector.load %arg4[%c1_24, %c0_25, %c0_26] : memref<4x32x128xf32, #tpu.memory_space<vmem>>, vector<1x32x128xf32>
    %35 = vector.shape_cast %34 : vector<1x32x128xf32> to vector<32x128xf32>
    %cst_27 = arith.constant dense<0.000000e+00> : vector<13x128xf32>
    %36 = tpu.matmul %33, %35, %cst_27 {dimension_numbers = #tpu.dot_dimension_numbers<[1], [0], [0], [1], [0, 0, 1, 1], [], []>} : vector<13x32xf32>, vector<32x128xf32>, vector<13x128xf32> -> vector<13x128xf32>
    %37 = arith.addf %32, %36 : vector<13x128xf32>
    %38 = vector.extract_strided_slice %1 {offsets = [2, 0], sizes = [13, 32], strides = [1, 1]} : vector<16x32xf32> to vector<13x32xf32>
    %c2_28 = arith.constant 2 : index
    %c0_29 = arith.constant 0 : index
    %c0_30 = arith.constant 0 : index
    %39 = vector.load %arg4[%c2_28, %c0_29, %c0_30] : memref<4x32x128xf32, #tpu.memory_space<vmem>>, vector<1x32x128xf32>
    %40 = vector.shape_cast %39 : vector<1x32x128xf32> to vector<32x128xf32>
    %cst_31 = arith.constant dense<0.000000e+00> : vector<13x128xf32>
    %41 = tpu.matmul %38, %40, %cst_31 {dimension_numbers = #tpu.dot_dimension_numbers<[1], [0], [0], [1], [0, 0, 1, 1], [], []>} : vector<13x32xf32>, vector<32x128xf32>, vector<13x128xf32> -> vector<13x128xf32>
    %42 = arith.addf %37, %41 : vector<13x128xf32>
    %43 = vector.extract_strided_slice %1 {offsets = [3, 0], sizes = [13, 32], strides = [1, 1]} : vector<16x32xf32> to vector<13x32xf32>
    %c3 = arith.constant 3 : index
    %c0_32 = arith.constant 0 : index
    %c0_33 = arith.constant 0 : index
    %44 = vector.load %arg4[%c3, %c0_32, %c0_33] : memref<4x32x128xf32, #tpu.memory_space<vmem>>, vector<1x32x128xf32>
    %45 = vector.shape_cast %44 : vector<1x32x128xf32> to vector<32x128xf32>
    %cst_34 = arith.constant dense<0.000000e+00> : vector<13x128xf32>
    %46 = tpu.matmul %43, %45, %cst_34 {dimension_numbers = #tpu.dot_dimension_numbers<[1], [0], [0], [1], [0, 0, 1, 1], [], []>} : vector<13x32xf32>, vector<32x128xf32>, vector<13x128xf32> -> vector<13x128xf32>
    %47 = arith.addf %42, %46 : vector<13x128xf32>
    %c0_35 = arith.constant 0 : index
    %c0_36 = arith.constant 0 : index
    %48 = vector.load %arg5[%c0_35, %c0_36] : memref<1x128xf32, #tpu.memory_space<vmem>>, vector<1x128xf32>
    %49 = vector.broadcast %48 : vector<1x128xf32> to vector<13x128xf32>
    %50 = arith.addf %47, %49 : vector<13x128xf32>
    %cst_37 = arith.constant 0.000000e+00 : f32
    %51 = vector.broadcast %cst_37 : f32 to vector<13x128xf32>
    %52 = arith.maximumf %50, %51 : vector<13x128xf32>
    %cst_38 = arith.constant dense<0xFF800000> : vector<128xf32>
    %53 = vector.multi_reduction <maximumf>, %52, %cst_38 [0] : vector<13x128xf32> to vector<128xf32>
    %c0_39 = arith.constant 0 : index
    %c1_40 = arith.constant 1 : index
    %c0_41 = arith.constant 0 : index
    %54 = vector.load %arg8[%c0_39, %c1_40, %c0_41] : memref<1x3x128xf32, #tpu.memory_space<vmem>>, vector<1x1x128xf32>
    %55 = vector.shape_cast %54 : vector<1x1x128xf32> to vector<128xf32>
    %56 = vector.shape_cast %53 : vector<128xf32> to vector<1x1x128xf32>
    tpu.vector_store %arg8[%c0_39, %c1_40, %c0_41], %56 {strides = array<i32>} : memref<1x3x128xf32, #tpu.memory_space<vmem>>, vector<1x1x128xf32>,
    %cst_42 = arith.constant 0.000000e+00 : f32
    %57 = vector.broadcast %cst_42 : f32 to vector<12x128xf32>
    %58 = vector.extract_strided_slice %1 {offsets = [0, 0], sizes = [12, 32], strides = [1, 1]} : vector<16x32xf32> to vector<12x32xf32>
    %c0_43 = arith.constant 0 : index
    %c0_44 = arith.constant 0 : index
    %c0_45 = arith.constant 0 : index
    %59 = vector.load %arg6[%c0_43, %c0_44, %c0_45] : memref<5x32x128xf32, #tpu.memory_space<vmem>>, vector<1x32x128xf32>
    %60 = vector.shape_cast %59 : vector<1x32x128xf32> to vector<32x128xf32>
    %cst_46 = arith.constant dense<0.000000e+00> : vector<12x128xf32>
    %61 = tpu.matmul %58, %60, %cst_46 {dimension_numbers = #tpu.dot_dimension_numbers<[1], [0], [0], [1], [0, 0, 1, 1], [], []>} : vector<12x32xf32>, vector<32x128xf32>, vector<12x128xf32> -> vector<12x128xf32>
    %62 = arith.addf %57, %61 : vector<12x128xf32>
    %63 = vector.extract_strided_slice %1 {offsets = [1, 0], sizes = [12, 32], strides = [1, 1]} : vector<16x32xf32> to vector<12x32xf32>
    %c1_47 = arith.constant 1 : index
    %c0_48 = arith.constant 0 : index
    %c0_49 = arith.constant 0 : index
    %64 = vector.load %arg6[%c1_47, %c0_48, %c0_49] : memref<5x32x128xf32, #tpu.memory_space<vmem>>, vector<1x32x128xf32>
    %65 = vector.shape_cast %64 : vector<1x32x128xf32> to vector<32x128xf32>
    %cst_50 = arith.constant dense<0.000000e+00> : vector<12x128xf32>
    %66 = tpu.matmul %63, %65, %cst_50 {dimension_numbers = #tpu.dot_dimension_numbers<[1], [0], [0], [1], [0, 0, 1, 1], [], []>} : vector<12x32xf32>, vector<32x128xf32>, vector<12x128xf32> -> vector<12x128xf32>
    %67 = arith.addf %62, %66 : vector<12x128xf32>
    %68 = vector.extract_strided_slice %1 {offsets = [2, 0], sizes = [12, 32], strides = [1, 1]} : vector<16x32xf32> to vector<12x32xf32>
    %c2_51 = arith.constant 2 : index
    %c0_52 = arith.constant 0 : index
    %c0_53 = arith.constant 0 : index
    %69 = vector.load %arg6[%c2_51, %c0_52, %c0_53] : memref<5x32x128xf32, #tpu.memory_space<vmem>>, vector<1x32x128xf32>
    %70 = vector.shape_cast %69 : vector<1x32x128xf32> to vector<32x128xf32>
    %cst_54 = arith.constant dense<0.000000e+00> : vector<12x128xf32>
    %71 = tpu.matmul %68, %70, %cst_54 {dimension_numbers = #tpu.dot_dimension_numbers<[1], [0], [0], [1], [0, 0, 1, 1], [], []>} : vector<12x32xf32>, vector<32x128xf32>, vector<12x128xf32> -> vector<12x128xf32>
    %72 = arith.addf %67, %71 : vector<12x128xf32>
    %73 = vector.extract_strided_slice %1 {offsets = [3, 0], sizes = [12, 32], strides = [1, 1]} : vector<16x32xf32> to vector<12x32xf32>
    %c3_55 = arith.constant 3 : index
    %c0_56 = arith.constant 0 : index
    %c0_57 = arith.constant 0 : index
    %74 = vector.load %arg6[%c3_55, %c0_56, %c0_57] : memref<5x32x128xf32, #tpu.memory_space<vmem>>, vector<1x32x128xf32>
    %75 = vector.shape_cast %74 : vector<1x32x128xf32> to vector<32x128xf32>
    %cst_58 = arith.constant dense<0.000000e+00> : vector<12x128xf32>
    %76 = tpu.matmul %73, %75, %cst_58 {dimension_numbers = #tpu.dot_dimension_numbers<[1], [0], [0], [1], [0, 0, 1, 1], [], []>} : vector<12x32xf32>, vector<32x128xf32>, vector<12x128xf32> -> vector<12x128xf32>
    %77 = arith.addf %72, %76 : vector<12x128xf32>
    %78 = vector.extract_strided_slice %1 {offsets = [4, 0], sizes = [12, 32], strides = [1, 1]} : vector<16x32xf32> to vector<12x32xf32>
    %c4 = arith.constant 4 : index
    %c0_59 = arith.constant 0 : index
    %c0_60 = arith.constant 0 : index
    %79 = vector.load %arg6[%c4, %c0_59, %c0_60] : memref<5x32x128xf32, #tpu.memory_space<vmem>>, vector<1x32x128xf32>
    %80 = vector.shape_cast %79 : vector<1x32x128xf32> to vector<32x128xf32>
    %cst_61 = arith.constant dense<0.000000e+00> : vector<12x128xf32>
    %81 = tpu.matmul %78, %80, %cst_61 {dimension_numbers = #tpu.dot_dimension_numbers<[1], [0], [0], [1], [0, 0, 1, 1], [], []>} : vector<12x32xf32>, vector<32x128xf32>, vector<12x128xf32> -> vector<12x128xf32>
    %82 = arith.addf %77, %81 : vector<12x128xf32>
    %c0_62 = arith.constant 0 : index
    %c0_63 = arith.constant 0 : index
    %83 = vector.load %arg7[%c0_62, %c0_63] : memref<1x128xf32, #tpu.memory_space<vmem>>, vector<1x128xf32>
    %84 = vector.broadcast %83 : vector<1x128xf32> to vector<12x128xf32>
    %85 = arith.addf %82, %84 : vector<12x128xf32>
    %cst_64 = arith.constant 0.000000e+00 : f32
    %86 = vector.broadcast %cst_64 : f32 to vector<12x128xf32>
    %87 = arith.maximumf %85, %86 : vector<12x128xf32>
    %cst_65 = arith.constant dense<0xFF800000> : vector<128xf32>
    %88 = vector.multi_reduction <maximumf>, %87, %cst_65 [0] : vector<12x128xf32> to vector<128xf32>
    %c0_66 = arith.constant 0 : index
    %c2_67 = arith.constant 2 : index
    %c0_68 = arith.constant 0 : index
    %89 = vector.load %arg8[%c0_66, %c2_67, %c0_68] : memref<1x3x128xf32, #tpu.memory_space<vmem>>, vector<1x1x128xf32>
    %90 = vector.shape_cast %89 : vector<1x1x128xf32> to vector<128xf32>
    %91 = vector.shape_cast %88 : vector<128xf32> to vector<1x1x128xf32>
    tpu.vector_store %arg8[%c0_66, %c2_67, %c0_68], %91 {strides = array<i32>} : memref<1x3x128xf32, #tpu.memory_space<vmem>>, vector<1x1x128xf32>,
    return
  }
  func.func @transform_0(%arg0: i32) -> (i32, i32, i32) {
    %c0_i32 = arith.constant 0 : i32
    %c0_i32_0 = arith.constant 0 : i32
    %c0_i32_1 = arith.constant 0 : i32
    return %arg0, %c0_i32, %c0_i32_0 : i32, i32, i32
  }
  func.func @transform_1(%arg0: i32) -> (i32, i32, i32) {
    %c0_i32 = arith.constant 0 : i32
    %c0_i32_0 = arith.constant 0 : i32
    %c0_i32_1 = arith.constant 0 : i32
    %c0_i32_2 = arith.constant 0 : i32
    return %c0_i32, %c0_i32_0, %c0_i32_1 : i32, i32, i32
  }
  func.func @transform_2(%arg0: i32) -> (i32, i32) {
    %c0_i32 = arith.constant 0 : i32
    %c0_i32_0 = arith.constant 0 : i32
    %c0_i32_1 = arith.constant 0 : i32
    return %c0_i32, %c0_i32_0 : i32, i32
  }
  func.func @transform_3(%arg0: i32) -> (i32, i32, i32) {
    %c0_i32 = arith.constant 0 : i32
    %c0_i32_0 = arith.constant 0 : i32
    %c0_i32_1 = arith.constant 0 : i32
    %c0_i32_2 = arith.constant 0 : i32
    return %c0_i32, %c0_i32_0, %c0_i32_1 : i32, i32, i32
  }
  func.func @transform_4(%arg0: i32) -> (i32, i32) {
    %c0_i32 = arith.constant 0 : i32
    %c0_i32_0 = arith.constant 0 : i32
    %c0_i32_1 = arith.constant 0 : i32
    return %c0_i32, %c0_i32_0 : i32, i32
  }
  func.func @transform_5(%arg0: i32) -> (i32, i32, i32) {
    %c0_i32 = arith.constant 0 : i32
    %c0_i32_0 = arith.constant 0 : i32
    %c0_i32_1 = arith.constant 0 : i32
    %c0_i32_2 = arith.constant 0 : i32
    return %c0_i32, %c0_i32_0, %c0_i32_1 : i32, i32, i32
  }
  func.func @transform_6(%arg0: i32) -> (i32, i32) {
    %c0_i32 = arith.constant 0 : i32
    %c0_i32_0 = arith.constant 0 : i32
    %c0_i32_1 = arith.constant 0 : i32
    return %c0_i32, %c0_i32_0 : i32, i32
  }
  func.func @transform_7(%arg0: i32) -> (i32, i32, i32) {
    %c0_i32 = arith.constant 0 : i32
    %c0_i32_0 = arith.constant 0 : i32
    %c0_i32_1 = arith.constant 0 : i32
    return %arg0, %c0_i32, %c0_i32_0 : i32, i32, i32
  }
}

</mosaic_0001>

<llo_original>
// kernel: tpu_custom_call.1
$region0: #{tpu_custom_call.1}
  #allocation0 [shape = 'u32[]', space=smem, size = 0x4, offset = 0x4, fixed_abs, tag = 'smem constant byte address 0x4 - core index']
  #allocation1 [shape = 'u32[144,128]{1,0:T(1,128)}', space=vmem, size = 0x12000, scoped, tag = 'internal scratch']
  %s0 = inlined_call_operand.hbm [shape: f32[2,16,32], index: 0, kind: input, shape index: {}]
  %s1 = inlined_call_operand.hbm [shape: f32[3,32,128], index: 1, kind: input, shape index: {}]
  %s2 = inlined_call_operand.vmem [shape: f32[1,128], index: 2, kind: input, shape index: {}]
  %s3 = inlined_call_operand.hbm [shape: f32[4,32,128], index: 3, kind: input, shape index: {}]
  %s4 = inlined_call_operand.vmem [shape: f32[1,128], index: 4, kind: input, shape index: {}]
  %s5 = inlined_call_operand.hbm [shape: f32[5,32,128], index: 5, kind: input, shape index: {}]
  %s6 = inlined_call_operand.vmem [shape: f32[1,128], index: 6, kind: input, shape index: {}]
  %s7 = inlined_call_operand.vmem [shape: f32[2,3,128], index: 7, kind: output, shape index: {}]
  %s8 = sld [smem:[#allocation0]]
  $region77: #{tpu_custom_call.1} parent=0
    _
  %s10 = ssub.s32 1, %s8
  %s11 = scalar_select 0, %s10, %s8
  $region1: #{tpu_custom_call.1} parent=0
    #allocation2 [shape = 'u8[16384]{0}', space=vmem, size = 0x4000, scoped, tag = 'input window, operand 0']
    #allocation3 [shape = 's32[2]{0}', space=sflag, size = 0x8, scoped, tag = 'scoped memory for tpu_custom_call.1']
    #allocation4 [shape = 'u8[49152]{0}', space=vmem, size = 0xc000, scoped, tag = 'input window, operand 1, single buffered']
    #allocation5 [shape = 's32[1]{0}', space=sflag, size = 0x4, scoped, tag = 'scoped memory for tpu_custom_call.1']
    #allocation6 [shape = 'u8[65536]{0}', space=vmem, size = 0x10000, scoped, tag = 'input window, operand 3, single buffered']
    #allocation7 [shape = 'u8[81920]{0}', space=vmem, size = 0x14000, scoped, tag = 'input window, operand 5, single buffered']
    #allocation8 [shape = 's32[1]{0}', space=sflag, size = 0x4, scoped, tag = 'scoped memory for tpu_custom_call.1']
    %12 = vsyncpa [#allocation3], 0
    %s13 = scalar_lea.sflag [#allocation3], 1
    %14 = vsyncpa %s13, 0
    %15 = vsyncpa [#allocation5], 0
    %16 = vsyncpa [#allocation8], 0
    loop: start=0, step=1, limit=4
    $region2: #{tpu_custom_call.1} parent=1 // loop_pre_header
      _
    $region3: #{tpu_custom_call.1} parent=1 // loop_header
      %s18 = sphi 0, %s22
      %p19 = scmp.ge.s32.totalorder %s18, 4
      %s28 = sphi 0, %s30
      %s31 = sphi 0, %s28
      %s32 = sphi 0, %s31
      %s48 = sphi 0, %s32
      %s52 = sphi 0, %s52
      %s54 = sphi 0, %s52
      %s55 = sphi 0, %s54
      %s69 = sphi 0, %s55
      %s73 = sphi 0, %s73
      %s75 = sphi 0, %s73
      %s76 = sphi 0, %s75
      %s90 = sphi 0, %s76
      %s94 = sphi 0, %s94
      %s96 = sphi 0, %s94
      %s97 = sphi 0, %s96
      %s111 = sphi 0, %s97
      %s115 = sphi 0, %s115
      %s117 = sphi 0, %s115
      %s118 = sphi 0, %s117
      %s132 = sphi 0, %s118
      %s136 = sphi 0, %s136
      %s138 = sphi 0, %s136
      %s139 = sphi 0, %s138
      %s153 = sphi 0, %s139
      %s157 = sphi 0, %s157
      %s159 = sphi 0, %s157
      %s160 = sphi 0, %s159
      %s174 = sphi 0, %s160
      %s180 = sphi 0, %s182
      %s183 = sphi 0, %s180
      %s184 = sphi 0, %s183
      %s200 = sphi 0, %s184
    $region4: #{tpu_custom_call.1} parent=1 // loop_header_branch
      %21 = sbr.rel (%p19) target = $region8
    $region5: #{tpu_custom_call.1} parent=1 // loop_body
      %s23 = ssub.s32 %s18, 1
      %s24 = ssub.s32 %s18, 2
      %s25 = sadd.s32 %s18, 1
      %s26 = ssub.s32 %s18, %s25
      %p27 = scmp.eq.s32.totalorder %s26, 0
      %s29 = sadd.s32 %s28, 1
      %s30 = scalar_select %p27, %s28, %s29
      %p33 = pneg %p27
      %p34 = scmp.eq.s32.totalorder %s18, 1
      %p35 = por %p33, %p34
      %p36 = scmp.ne.s32.totalorder %s28, %s31
      %p37 = scmp.eq.s32.totalorder %s18, 0
      %p38 = por %p36, %p37
      %p39 = scmp.ne.s32.totalorder %s28, %s31
      %p40 = scmp.eq.s32.totalorder %s23, 1
      %p41 = por %p39, %p40
      %p42 = scmp.ne.s32.totalorder %s31, %s32
      %p43 = scmp.eq.s32.totalorder %s23, 0
      %p44 = por %p42, %p43
      %p45 = scmp.ne.s32.totalorder %s31, %s32
      %p46 = scmp.eq.s32.totalorder %s24, 1
      %p47 = por %p45, %p46
      %p49 = scmp.ne.s32.totalorder %s32, %s48
      %p50 = scmp.eq.s32.totalorder %s24, 0
      %p51 = por %p49, %p50
      %s53 = sadd.s32 %s52, 1
      %p56 = scmp.eq.s32.totalorder %s18, 1
      %p57 = scmp.ne.s32.totalorder %s52, %s54
      %p58 = scmp.eq.s32.totalorder %s18, 0
      %p59 = por %p57, %p58
      %p60 = scmp.ne.s32.totalorder %s52, %s54
      %p61 = scmp.eq.s32.totalorder %s23, 1
      %p62 = por %p60, %p61
      %p63 = scmp.ne.s32.totalorder %s54, %s55
      %p64 = scmp.eq.s32.totalorder %s23, 0
      %p65 = por %p63, %p64
      %p66 = scmp.ne.s32.totalorder %s54, %s55
      %p67 = scmp.eq.s32.totalorder %s24, 1
      %p68 = por %p66, %p67
      %p70 = scmp.ne.s32.totalorder %s55, %s69
      %p71 = scmp.eq.s32.totalorder %s24, 0
      %p72 = por %p70, %p71
      %s74 = sadd.s32 %s73, 1
      %p77 = scmp.eq.s32.totalorder %s18, 1
      %p78 = scmp.ne.s32.totalorder %s73, %s75
      %p79 = scmp.eq.s32.totalorder %s18, 0
      %p80 = por %p78, %p79
      %p81 = scmp.ne.s32.totalorder %s73, %s75
      %p82 = scmp.eq.s32.totalorder %s23, 1
      %p83 = por %p81, %p82
      %p84 = scmp.ne.s32.totalorder %s75, %s76
      %p85 = scmp.eq.s32.totalorder %s23, 0
      %p86 = por %p84, %p85
      %p87 = scmp.ne.s32.totalorder %s75, %s76
      %p88 = scmp.eq.s32.totalorder %s24, 1
      %p89 = por %p87, %p88
      %p91 = scmp.ne.s32.totalorder %s76, %s90
      %p92 = scmp.eq.s32.totalorder %s24, 0
      %p93 = por %p91, %p92
      %s95 = sadd.s32 %s94, 1
      %p98 = scmp.eq.s32.totalorder %s18, 1
      %p99 = scmp.ne.s32.totalorder %s94, %s96
      %p100 = scmp.eq.s32.totalorder %s18, 0
      %p101 = por %p99, %p100
      %p102 = scmp.ne.s32.totalorder %s94, %s96
      %p103 = scmp.eq.s32.totalorder %s23, 1
      %p104 = por %p102, %p103
      %p105 = scmp.ne.s32.totalorder %s96, %s97
      %p106 = scmp.eq.s32.totalorder %s23, 0
      %p107 = por %p105, %p106
      %p108 = scmp.ne.s32.totalorder %s96, %s97
      %p109 = scmp.eq.s32.totalorder %s24, 1
      %p110 = por %p108, %p109
      %p112 = scmp.ne.s32.totalorder %s97, %s111
      %p113 = scmp.eq.s32.totalorder %s24, 0
      %p114 = por %p112, %p113
      %s116 = sadd.s32 %s115, 1
      %p119 = scmp.eq.s32.totalorder %s18, 1
      %p120 = scmp.ne.s32.totalorder %s115, %s117
      %p121 = scmp.eq.s32.totalorder %s18, 0
      %p122 = por %p120, %p121
      %p123 = scmp.ne.s32.totalorder %s115, %s117
      %p124 = scmp.eq.s32.totalorder %s23, 1
      %p125 = por %p123, %p124
      %p126 = scmp.ne.s32.totalorder %s117, %s118
      %p127 = scmp.eq.s32.totalorder %s23, 0
      %p128 = por %p126, %p127
      %p129 = scmp.ne.s32.totalorder %s117, %s118
      %p130 = scmp.eq.s32.totalorder %s24, 1
      %p131 = por %p129, %p130
      %p133 = scmp.ne.s32.totalorder %s118, %s132
      %p134 = scmp.eq.s32.totalorder %s24, 0
      %p135 = por %p133, %p134
      %s137 = sadd.s32 %s136, 1
      %p140 = scmp.eq.s32.totalorder %s18, 1
      %p141 = scmp.ne.s32.totalorder %s136, %s138
      %p142 = scmp.eq.s32.totalorder %s18, 0
      %p143 = por %p141, %p142
      %p144 = scmp.ne.s32.totalorder %s136, %s138
      %p145 = scmp.eq.s32.totalorder %s23, 1
      %p146 = por %p144, %p145
      %p147 = scmp.ne.s32.totalorder %s138, %s139
      %p148 = scmp.eq.s32.totalorder %s23, 0
      %p149 = por %p147, %p148
      %p150 = scmp.ne.s32.totalorder %s138, %s139
      %p151 = scmp.eq.s32.totalorder %s24, 1
      %p152 = por %p150, %p151
      %p154 = scmp.ne.s32.totalorder %s139, %s153
      %p155 = scmp.eq.s32.totalorder %s24, 0
      %p156 = por %p154, %p155
      %s158 = sadd.s32 %s157, 1
      %p161 = scmp.eq.s32.totalorder %s18, 1
      %p162 = scmp.ne.s32.totalorder %s157, %s159
      %p163 = scmp.eq.s32.totalorder %s18, 0
      %p164 = por %p162, %p163
      %p165 = scmp.ne.s32.totalorder %s157, %s159
      %p166 = scmp.eq.s32.totalorder %s23, 1
      %p167 = por %p165, %p166
      %p168 = scmp.ne.s32.totalorder %s159, %s160
      %p169 = scmp.eq.s32.totalorder %s23, 0
      %p170 = por %p168, %p169
      %p171 = scmp.ne.s32.totalorder %s159, %s160
      %p172 = scmp.eq.s32.totalorder %s24, 1
      %p173 = por %p171, %p172
      %p175 = scmp.ne.s32.totalorder %s160, %s174
      %p176 = scmp.eq.s32.totalorder %s24, 0
      %p177 = por %p175, %p176
      %s178 = ssub.s32 %s18, %s25
      %p179 = scmp.eq.s32.totalorder %s178, 0
      %s181 = sadd.s32 %s180, 1
      %s182 = scalar_select %p179, %s180, %s181
      %p185 = pneg %p179
      %p186 = scmp.eq.s32.totalorder %s18, 1
      %p187 = por %p185, %p186
      %p188 = scmp.ne.s32.totalorder %s180, %s183
      %p189 = scmp.eq.s32.totalorder %s18, 0
      %p190 = por %p188, %p189
      %p191 = scmp.ne.s32.totalorder %s180, %s183
      %p192 = scmp.eq.s32.totalorder %s23, 1
      %p193 = por %p191, %p192
      %p194 = scmp.ne.s32.totalorder %s183, %s184
      %p195 = scmp.eq.s32.totalorder %s23, 0
      %p196 = por %p194, %p195
      %p197 = scmp.ne.s32.totalorder %s183, %s184
      %p198 = scmp.eq.s32.totalorder %s24, 1
      %p199 = por %p197, %p198
      %p201 = scmp.ne.s32.totalorder %s184, %s200
      %p202 = scmp.eq.s32.totalorder %s24, 0
      %p203 = por %p201, %p202
      %p204 = scmp.le.s32.totalorder 1, %s18
      %p205 = scmp.lt.s32.totalorder %s18, 3
      %p206 = pnand %p204, %p205
      %p207 = pneg %p206
      // Predicated region
      $region9: #{tpu_custom_call.1} parent=5 // pred_check
        _
      $region10: #{tpu_custom_call.1} parent=5 // pred_check_branch
        %209 = sbr.rel (%p206) target = $region12
      $region11: #{tpu_custom_call.1} parent=5 // pred_region
        %s210 = ssub.s32 %s18, 1
        // Predicated region
        $region13: #{tpu_custom_call.1} parent=11 // pred_check
          %p211 = pneg %p65
        $region14: #{tpu_custom_call.1} parent=11 // pred_check_branch
          %213 = sbr.rel (%p211) target = $region16
        $region15: #{tpu_custom_call.1} parent=11 // pred_region
          %s215 = ssub.s32 1536, 1536
          %216 = vsyncadd [#allocation5], %s215
          %s217 = sshll.u32 [#allocation4], 4
          %s218 = int_to_ptr.vmem [resolvable:$true] %s217
          %223 = dma.hbm_to_vmem [thread:$0]  %s1, 1536, %s218, [#allocation5], 128, 128, 8
        $region16: #{tpu_custom_call.1} parent=11 // pred_fallthru
          _
        // Predicated region
        $region17: #{tpu_custom_call.1} parent=11 // pred_check
          %p224 = pneg %p86
        $region18: #{tpu_custom_call.1} parent=11 // pred_check_branch
          %226 = sbr.rel (%p224) target = $region20
        $region19: #{tpu_custom_call.1} parent=11 // pred_region
          _
        $region20: #{tpu_custom_call.1} parent=11 // pred_fallthru
          _
        // Predicated region
        $region21: #{tpu_custom_call.1} parent=11 // pred_check
          %p227 = pneg %p107
        $region22: #{tpu_custom_call.1} parent=11 // pred_check_branch
          %229 = sbr.rel (%p227) target = $region24
        $region23: #{tpu_custom_call.1} parent=11 // pred_region
          %s231 = ssub.s32 2048, 2048
          %232 = vsyncadd [#allocation5], %s231
          %s233 = sshll.u32 [#allocation6], 4
          %s234 = int_to_ptr.vmem [resolvable:$true] %s233
          %239 = dma.hbm_to_vmem [thread:$0]  %s3, 2048, %s234, [#allocation5], 128, 128, 8
        $region24: #{tpu_custom_call.1} parent=11 // pred_fallthru
          _
        // Predicated region
        $region25: #{tpu_custom_call.1} parent=11 // pred_check
          %p240 = pneg %p128
        $region26: #{tpu_custom_call.1} parent=11 // pred_check_branch
          %242 = sbr.rel (%p240) target = $region28
        $region27: #{tpu_custom_call.1} parent=11 // pred_region
          _
        $region28: #{tpu_custom_call.1} parent=11 // pred_fallthru
          _
        // Predicated region
        $region29: #{tpu_custom_call.1} parent=11 // pred_check
          %p243 = pneg %p149
        $region30: #{tpu_custom_call.1} parent=11 // pred_check_branch
          %245 = sbr.rel (%p243) target = $region32
        $region31: #{tpu_custom_call.1} parent=11 // pred_region
          %s247 = ssub.s32 2560, 2560
          %248 = vsyncadd [#allocation8], %s247
          %s249 = sshll.u32 [#allocation7], 4
          %s250 = int_to_ptr.vmem [resolvable:$true] %s249
          %255 = dma.hbm_to_vmem [thread:$0]  %s5, 2560, %s250, [#allocation8], 128, 128, 8
        $region32: #{tpu_custom_call.1} parent=11 // pred_fallthru
          _
        // Predicated region
        $region33: #{tpu_custom_call.1} parent=11 // pred_check
          %p256 = pneg %p170
        $region34: #{tpu_custom_call.1} parent=11 // pred_check_branch
          %258 = sbr.rel (%p256) target = $region36
        $region35: #{tpu_custom_call.1} parent=11 // pred_region
          _
        $region36: #{tpu_custom_call.1} parent=11 // pred_fallthru
          _
      $region12: #{tpu_custom_call.1} parent=5 // pred_fallthru
        _
      %p259 = scmp.lt.s32.totalorder %s18, 2
      // Predicated region
      $region37: #{tpu_custom_call.1} parent=5 // pred_check
        %p260 = pneg %p259
      $region38: #{tpu_custom_call.1} parent=5 // pred_check_branch
        %262 = sbr.rel (%p260) target = $region40
      $region39: #{tpu_custom_call.1} parent=5 // pred_region
        // Predicated region
        $region41: #{tpu_custom_call.1} parent=39 // pred_check
          %p263 = pneg %p38
        $region42: #{tpu_custom_call.1} parent=39 // pred_check_branch
          %265 = sbr.rel (%p263) target = $region44
        $region43: #{tpu_custom_call.1} parent=39 // pred_region
          %s266 = sand.u32 %s28, 1
          %s267 = scalar_lea.sflag [#allocation3], %s266
          %s268 = sand.u32 %s28, 1
          %s269 = smul.addr %s268, 16
          %s270 = scalar_lea.vmem [#allocation2], %s269
          %s272 = ssub.s32 256, 256
          %273 = vsyncadd %s267, %s272
          %s274 = smul.addr %s18, 2
          %s275 = smul.addr %s274, 128
          %s276 = scalar_lea.hbm %s0, %s275
          %s277 = sshll.u32 %s270, 4
          %s278 = int_to_ptr.vmem [resolvable:$true] %s277
          %283 = dma.hbm_to_vmem [thread:$0]  %s276, 256, %s278, %s267, 128, 128, 8
        $region44: #{tpu_custom_call.1} parent=39 // pred_fallthru
          _
      $region40: #{tpu_custom_call.1} parent=5 // pred_fallthru
        _
      %p284 = scmp.le.s32.totalorder 1, %s18
      %p285 = scmp.lt.s32.totalorder %s18, 3
      %p286 = pnand %p284, %p285
      %p287 = pneg %p286
      // Predicated region
      $region45: #{tpu_custom_call.1} parent=5 // pred_check
        _
      $region46: #{tpu_custom_call.1} parent=5 // pred_check_branch
        %289 = sbr.rel (%p286) target = $region48
      $region47: #{tpu_custom_call.1} parent=5 // pred_region
        %s290 = ssub.s32 %s18, 1
        %s291 = sand.u32 %s31, 1
        %s292 = scalar_lea.sflag [#allocation3], %s291
        %s293 = sand.u32 %s31, 1
        %s294 = smul.addr %s293, 16
        %s295 = scalar_lea.vmem [#allocation2], %s294
        // Predicated region
        $region49: #{tpu_custom_call.1} parent=47 // pred_check
          %p296 = pneg %p44
        $region50: #{tpu_custom_call.1} parent=47 // pred_check_branch
          %298 = sbr.rel (%p296) target = $region52
        $region51: #{tpu_custom_call.1} parent=47 // pred_region
          %299 = dma.done %s292, 256
        $region52: #{tpu_custom_call.1} parent=47 // pred_fallthru
          _
        // Predicated region
        $region53: #{tpu_custom_call.1} parent=47 // pred_check
          %p300 = pneg %p65
        $region54: #{tpu_custom_call.1} parent=47 // pred_check_branch
          %302 = sbr.rel (%p300) target = $region56
        $region55: #{tpu_custom_call.1} parent=47 // pred_region
          %303 = dma.done [#allocation5], 1536
        $region56: #{tpu_custom_call.1} parent=47 // pred_fallthru
          _
        // Predicated region
        $region57: #{tpu_custom_call.1} parent=47 // pred_check
          %p304 = pneg %p107
        $region58: #{tpu_custom_call.1} parent=47 // pred_check_branch
          %306 = sbr.rel (%p304) target = $region60
        $region59: #{tpu_custom_call.1} parent=47 // pred_region
          %307 = dma.done [#allocation5], 2048
        $region60: #{tpu_custom_call.1} parent=47 // pred_fallthru
          _
        // Predicated region
        $region61: #{tpu_custom_call.1} parent=47 // pred_check
          %p308 = pneg %p149
        $region62: #{tpu_custom_call.1} parent=47 // pred_check_branch
          %310 = sbr.rel (%p308) target = $region64
        $region63: #{tpu_custom_call.1} parent=47 // pred_region
          %311 = dma.done [#allocation8], 2560
        $region64: #{tpu_custom_call.1} parent=47 // pred_fallthru
          _
        %s312 = sand.u32 %s31, 1
        %s313 = scalar_lea.sflag [#allocation3], %s312
        %s314 = sand.u32 %s31, 1
        %s315 = smul.addr %s314, 16
        %s316 = scalar_lea.vmem [#allocation2], %s315
        %p317 = pneg %p44
        %p318 = pneg %p41
        %p319 = pneg %p65
        %p320 = pneg %p62
        %p321 = pneg %p86
        %p322 = pneg %p83
        %p323 = pneg %p107
        %p324 = pneg %p104
        %p325 = pneg %p128
        %p326 = pneg %p125
        %p327 = pneg %p149
        %p328 = pneg %p146
        %p329 = pneg %p170
        %p330 = pneg %p167
        %p331 = pneg %p196
        %p332 = pneg %p193
        %p333 = scmp.lt.s32.totalorder %s23, 1
        %s334 = scalar_select %p333, %s23, 1
        %s335 = smul.addr %s334, 4
        %s336 = scalar_lea.vmem %s7, %s335
        %p337 = scmp.lt.s32.totalorder %s23, 1
        %s338 = scalar_select %p337, %s23, 1
        %s339 = smul.addr %s338, 4
        %s340 = scalar_lea.vmem %s7, %s339
        %v341 = vld [vmem:[%s295] sm:$0xff]
        %v342 = vld [vmem:[%s295 + $0x8] sm:$0xff]
        %v343 = vld [vmem:[#allocation4] sm:$0xff]
        %v344 = vld [vmem:[#allocation4 + $0x8] sm:$0xff]
        %v345 = vld [vmem:[#allocation4 + $0x10] sm:$0xff]
        %v346 = vld [vmem:[#allocation4 + $0x18] sm:$0xff]
        %s347 = scalar_lea.vmem [#allocation4], 32
        %v348 = vld [vmem:[%s347] sm:$0xff]
        %v349 = vld [vmem:[%s347 + $0x8] sm:$0xff]
        %v350 = vld [vmem:[%s347 + $0x10] sm:$0xff]
        %v351 = vld [vmem:[%s347 + $0x18] sm:$0xff]
        %vm354 = vcmask 1046528
        %v355 = vrot.slane %v341, 1
        %v356 = vrot.slane %v342, 1
        %v357 = vsel %vm354, %v355, %v356
        %vm358 = vcmask 261120
        %v359 = vsel %vm358, %v357, 0
        %v361 = vsel %vm358, %v356, 0
        %363 = vmatprep.subr.mxu0 0.0
        %364 = vmatpush1.msra.mxu0 %v348
        %365 = vmatprep.subr.mxu0 0.0
        %366 = vmatpush1.msra.mxu0 %v349
        %367 = vmatprep.subr.mxu0 0.0
        %368 = vmatpush1.msra.mxu0 %v350
        %369 = vmatprep.subr.mxu0 0.0
        %370 = vmatpush1.msra.mxu0 %v351
        %371 = vmatprep.subr.mxu0 0.0
        %372 = vmatpush1.msra.mxu0 0.0
        %373 = vmatprep.subr.mxu0 0.0
        %374 = vmatpush1.msra.mxu0 0.0
        %375 = vmatprep.subr.mxu0 0.0
        %376 = vmatpush1.msra.mxu0 0.0
        %377 = vmatprep.subr.mxu0 0.0
        %378 = vmatpush1.msra.mxu0 0.0
        %379 = vmatprep.subr.mxu0 0.0
        %380 = vmatpush1.msra.mxu0 0.0
        %381 = vmatprep.subr.mxu0 0.0
        %382 = vmatpush1.msra.mxu0 0.0
        %383 = vmatprep.subr.mxu0 0.0
        %384 = vmatpush1.msra.mxu0 0.0
        %385 = vmatprep.subr.mxu0 0.0
        %386 = vmatpush1.msra.mxu0 0.0
        %387 = vmatprep.subr.mxu0 0.0
        %388 = vmatpush1.msra.mxu0 0.0
        %389 = vmatprep.subr.mxu0 0.0
        %390 = vmatpush1.msra.mxu0 0.0
        %391 = vmatprep.subr.mxu0 0.0
        %392 = vmatpush1.msra.mxu0 0.0
        %393 = vmatprep.subr.mxu0 0.0
        %394 = vmatpush1.msra.mxu0 0.0
        %395 = vmatprep.subr.mxu0 0.0
        %396 = vmatpush1.msra.mxu0 0.0
        %397 = vmatprep.subr.mxu0 0.0
        %398 = vmatpush1.msra.mxu0 0.0
        %399 = vmatprep.subr.mxu0 0.0
        %400 = vmatpush1.msra.mxu0 0.0
        %401 = vmatprep.subr.mxu0 0.0
        %402 = vmatpush1.msra.mxu0 0.0
        %403 = vmatprep.subr.mxu0 0.0
        %404 = vmatpush1.msra.mxu0 0.0
        %405 = vmatprep.subr.mxu0 0.0
        %406 = vmatpush1.msra.mxu0 0.0
        %407 = vmatprep.subr.mxu0 0.0
        %408 = vmatpush1.msra.mxu0 0.0
        %409 = vmatprep.subr.mxu0 0.0
        %410 = vmatpush1.msra.mxu0 0.0
        %411 = vmatprep.subr.mxu0 0.0
        %412 = vmatpush1.msra.mxu0 0.0
        %413 = vmatprep.subr.mxu0 0.0
        %414 = vmatpush1.msra.mxu0 0.0
        %415 = vmatprep.subr.mxu0 0.0
        %416 = vmatpush1.msra.mxu0 0.0
        %417 = vmatprep.subr.mxu0 0.0
        %418 = vmatpush1.msra.mxu0 0.0
        %419 = vmatprep.subr.mxu0 0.0
        %420 = vmatpush1.msra.mxu0 0.0
        %421 = vmatprep.subr.mxu0 0.0
        %422 = vmatpush1.msra.mxu0 0.0
        %423 = vmatprep.subr.mxu0 0.0
        %424 = vmatpush1.msra.mxu0 0.0
        %425 = vmatprep.subr.mxu0 0.0
        %426 = vmatpush1.msra.mxu0 0.0
        %427 = vmatprep.mubr.f32.mxu0 0.0
        %428 = vmatmul.mubr.f32.gmra.mrb[0].mxu0 %v359
        %v429 = vpop.f32.mrb[0].mxu0
        %v430 = vadd.f32 0.0, %v429
        %v431 = vpop.f32.mrb[0].mxu0
        %432 = vmatprep.mubr.f32.mxu0 0.0
        %433 = vmatmul.mubr.f32.gmra.mrb[0].mxu0 %v361
        %v434 = vpop.f32.mrb[0].mxu0
        %v435 = vadd.f32 0.0, %v434
        %v436 = vpop.f32.mrb[0].mxu0
        %437 = vdwg.mxu0
        %v438 = vsel %vm358, %v341, 0
        %v440 = vsel %vm358, %v342, 0
        %442 = vmatprep.subr.mxu0 0.0
        %443 = vmatpush1.msra.mxu0 %v343
        %444 = vmatprep.subr.mxu0 0.0
        %445 = vmatpush1.msra.mxu0 %v344
        %446 = vmatprep.subr.mxu0 0.0
        %447 = vmatpush1.msra.mxu0 %v345
        %448 = vmatprep.subr.mxu0 0.0
        %449 = vmatpush1.msra.mxu0 %v346
        %450 = vmatprep.subr.mxu0 0.0
        %451 = vmatpush1.msra.mxu0 0.0
        %452 = vmatprep.subr.mxu0 0.0
        %453 = vmatpush1.msra.mxu0 0.0
        %454 = vmatprep.subr.mxu0 0.0
        %455 = vmatpush1.msra.mxu0 0.0
        %456 = vmatprep.subr.mxu0 0.0
        %457 = vmatpush1.msra.mxu0 0.0
        %458 = vmatprep.subr.mxu0 0.0
        %459 = vmatpush1.msra.mxu0 0.0
        %460 = vmatprep.subr.mxu0 0.0
        %461 = vmatpush1.msra.mxu0 0.0
        %462 = vmatprep.subr.mxu0 0.0
        %463 = vmatpush1.msra.mxu0 0.0
        %464 = vmatprep.subr.mxu0 0.0
        %465 = vmatpush1.msra.mxu0 0.0
        %466 = vmatprep.subr.mxu0 0.0
        %467 = vmatpush1.msra.mxu0 0.0
        %468 = vmatprep.subr.mxu0 0.0
        %469 = vmatpush1.msra.mxu0 0.0
        %470 = vmatprep.subr.mxu0 0.0
        %471 = vmatpush1.msra.mxu0 0.0
        %472 = vmatprep.subr.mxu0 0.0
        %473 = vmatpush1.msra.mxu0 0.0
        %474 = vmatprep.subr.mxu0 0.0
        %475 = vmatpush1.msra.mxu0 0.0
        %476 = vmatprep.subr.mxu0 0.0
        %477 = vmatpush1.msra.mxu0 0.0
        %478 = vmatprep.subr.mxu0 0.0
        %479 = vmatpush1.msra.mxu0 0.0
        %480 = vmatprep.subr.mxu0 0.0
        %481 = vmatpush1.msra.mxu0 0.0
        %482 = vmatprep.subr.mxu0 0.0
        %483 = vmatpush1.msra.mxu0 0.0
        %484 = vmatprep.subr.mxu0 0.0
        %485 = vmatpush1.msra.mxu0 0.0
        %486 = vmatprep.subr.mxu0 0.0
        %487 = vmatpush1.msra.mxu0 0.0
        %488 = vmatprep.subr.mxu0 0.0
        %489 = vmatpush1.msra.mxu0 0.0
        %490 = vmatprep.subr.mxu0 0.0
        %491 = vmatpush1.msra.mxu0 0.0
        %492 = vmatprep.subr.mxu0 0.0
        %493 = vmatpush1.msra.mxu0 0.0
        %494 = vmatprep.subr.mxu0 0.0
        %495 = vmatpush1.msra.mxu0 0.0
        %496 = vmatprep.subr.mxu0 0.0
        %497 = vmatpush1.msra.mxu0 0.0
        %498 = vmatprep.subr.mxu0 0.0
        %499 = vmatpush1.msra.mxu0 0.0
        %500 = vmatprep.subr.mxu0 0.0
        %501 = vmatpush1.msra.mxu0 0.0
        %502 = vmatprep.subr.mxu0 0.0
        %503 = vmatpush1.msra.mxu0 0.0
        %504 = vmatprep.subr.mxu0 0.0
        %505 = vmatpush1.msra.mxu0 0.0
        %506 = vmatprep.mubr.f32.mxu0 0.0
        %507 = vmatmul.mubr.f32.gmra.mrb[0].mxu0 %v438
        %v508 = vpop.f32.mrb[0].mxu0
        %v509 = vadd.f32 %v430, %v508
        %v510 = vpop.f32.mrb[0].mxu0
        %511 = vmatprep.mubr.f32.mxu0 0.0
        %512 = vmatmul.mubr.f32.gmra.mrb[0].mxu0 %v440
        %v513 = vpop.f32.mrb[0].mxu0
        %v514 = vadd.f32 %v435, %v513
        %v515 = vpop.f32.mrb[0].mxu0
        %516 = vdwg.mxu0
        %s517 = scalar_lea.vmem [#allocation4], 64
        %v518 = vld [vmem:[%s517] sm:$0xff]
        %v519 = vld [vmem:[%s517 + $0x8] sm:$0xff]
        %v520 = vld [vmem:[%s517 + $0x10] sm:$0xff]
        %v521 = vld [vmem:[%s517 + $0x18] sm:$0xff]
        %vm522 = vcmask 1045504
        %v523 = vrot.slane %v341, 2
        %v524 = vrot.slane %v342, 2
        %v525 = vsel %vm522, %v523, %v524
        %v526 = vsel %vm358, %v525, 0
        %v528 = vsel %vm358, %v524, 0
        %530 = vmatprep.subr.mxu0 0.0
        %531 = vmatpush1.msra.mxu0 %v518
        %532 = vmatprep.subr.mxu0 0.0
        %533 = vmatpush1.msra.mxu0 %v519
        %534 = vmatprep.subr.mxu0 0.0
        %535 = vmatpush1.msra.mxu0 %v520
        %536 = vmatprep.subr.mxu0 0.0
        %537 = vmatpush1.msra.mxu0 %v521
        %538 = vmatprep.subr.mxu0 0.0
        %539 = vmatpush1.msra.mxu0 0.0
        %540 = vmatprep.subr.mxu0 0.0
        %541 = vmatpush1.msra.mxu0 0.0
        %542 = vmatprep.subr.mxu0 0.0
        %543 = vmatpush1.msra.mxu0 0.0
        %544 = vmatprep.subr.mxu0 0.0
        %545 = vmatpush1.msra.mxu0 0.0
        %546 = vmatprep.subr.mxu0 0.0
        %547 = vmatpush1.msra.mxu0 0.0
        %548 = vmatprep.subr.mxu0 0.0
        %549 = vmatpush1.msra.mxu0 0.0
        %550 = vmatprep.subr.mxu0 0.0
        %551 = vmatpush1.msra.mxu0 0.0
        %552 = vmatprep.subr.mxu0 0.0
        %553 = vmatpush1.msra.mxu0 0.0
        %554 = vmatprep.subr.mxu0 0.0
        %555 = vmatpush1.msra.mxu0 0.0
        %556 = vmatprep.subr.mxu0 0.0
        %557 = vmatpush1.msra.mxu0 0.0
        %558 = vmatprep.subr.mxu0 0.0
        %559 = vmatpush1.msra.mxu0 0.0
        %560 = vmatprep.subr.mxu0 0.0
        %561 = vmatpush1.msra.mxu0 0.0
        %562 = vmatprep.subr.mxu0 0.0
        %563 = vmatpush1.msra.mxu0 0.0
        %564 = vmatprep.subr.mxu0 0.0
        %565 = vmatpush1.msra.mxu0 0.0
        %566 = vmatprep.subr.mxu0 0.0
        %567 = vmatpush1.msra.mxu0 0.0
        %568 = vmatprep.subr.mxu0 0.0
        %569 = vmatpush1.msra.mxu0 0.0
        %570 = vmatprep.subr.mxu0 0.0
        %571 = vmatpush1.msra.mxu0 0.0
        %572 = vmatprep.subr.mxu0 0.0
        %573 = vmatpush1.msra.mxu0 0.0
        %574 = vmatprep.subr.mxu0 0.0
        %575 = vmatpush1.msra.mxu0 0.0
        %576 = vmatprep.subr.mxu0 0.0
        %577 = vmatpush1.msra.mxu0 0.0
        %578 = vmatprep.subr.mxu0 0.0
        %579 = vmatpush1.msra.mxu0 0.0
        %580 = vmatprep.subr.mxu0 0.0
        %581 = vmatpush1.msra.mxu0 0.0
        %582 = vmatprep.subr.mxu0 0.0
        %583 = vmatpush1.msra.mxu0 0.0
        %584 = vmatprep.subr.mxu0 0.0
        %585 = vmatpush1.msra.mxu0 0.0
        %586 = vmatprep.subr.mxu0 0.0
        %587 = vmatpush1.msra.mxu0 0.0
        %588 = vmatprep.subr.mxu0 0.0
        %589 = vmatpush1.msra.mxu0 0.0
        %590 = vmatprep.subr.mxu0 0.0
        %591 = vmatpush1.msra.mxu0 0.0
        %592 = vmatprep.subr.mxu0 0.0
        %593 = vmatpush1.msra.mxu0 0.0
        %594 = vmatprep.mubr.f32.mxu0 0.0
        %595 = vmatmul.mubr.f32.gmra.mrb[0].mxu0 %v526
        %v596 = vpop.f32.mrb[0].mxu0
        %v597 = vadd.f32 0.0, %v596
        %v598 = vpop.f32.mrb[0].mxu0
        %599 = vmatprep.mubr.f32.mxu0 0.0
        %600 = vmatmul.mubr.f32.gmra.mrb[0].mxu0 %v528
        %v601 = vpop.f32.mrb[0].mxu0
        %v602 = vadd.f32 0.0, %v601
        %v603 = vpop.f32.mrb[0].mxu0
        %604 = vdwg.mxu0
        %v605 = vadd.f32 %v509, %v597
        %v606 = vadd.f32 %v514, %v602
        %v607 = vld [vmem:[%s2] sm:$0x1]
        %v609 = vlaneseq
        %v610 = vshrl.u32 %v609, 7
        %v611 = vsub.s32 0, %v610
        %v612 = vrot.slane %v607, %v611
        %v614 = vadd.f32 %v605, %v612
        %v615 = vadd.f32 %v606, %v612
        %v616 = vmax.f32 %v614, 0.0
        %v617 = vmax.f32 %v615, 0.0
        %v618 = vsel %vm522, %v617, -inf
        %v619 = vmax.f32 %v616, %v618
        %v620 = vrot.slane %v619, 4
        %v621 = vmax.f32 %v619, %v620
        %v622 = vrot.slane %v621, 2
        %v623 = vmax.f32 %v621, %v622
        %v624 = vrot.slane %v623, 1
        %v625 = vmax.f32 %v623, %v624
        %626 = vst [vmem:[%s340] sm:$0x1] %v625
        %v627 = vld [vmem:[#allocation6] sm:$0xff]
        %v628 = vld [vmem:[#allocation6 + $0x8] sm:$0xff]
        %v629 = vld [vmem:[#allocation6 + $0x10] sm:$0xff]
        %v630 = vld [vmem:[#allocation6 + $0x18] sm:$0xff]
        %s631 = scalar_lea.vmem [#allocation6], 32
        %v632 = vld [vmem:[%s631] sm:$0xff]
        %v633 = vld [vmem:[%s631 + $0x8] sm:$0xff]
        %v634 = vld [vmem:[%s631 + $0x10] sm:$0xff]
        %v635 = vld [vmem:[%s631 + $0x18] sm:$0xff]
        %636 = vmatprep.subr.mxu0 0.0
        %637 = vmatpush1.msra.mxu0 %v632
        %638 = vmatprep.subr.mxu0 0.0
        %639 = vmatpush1.msra.mxu0 %v633
        %640 = vmatprep.subr.mxu0 0.0
        %641 = vmatpush1.msra.mxu0 %v634
        %642 = vmatprep.subr.mxu0 0.0
        %643 = vmatpush1.msra.mxu0 %v635
        %644 = vmatprep.subr.mxu0 0.0
        %645 = vmatpush1.msra.mxu0 0.0
        %646 = vmatprep.subr.mxu0 0.0
        %647 = vmatpush1.msra.mxu0 0.0
        %648 = vmatprep.subr.mxu0 0.0
        %649 = vmatpush1.msra.mxu0 0.0
        %650 = vmatprep.subr.mxu0 0.0
        %651 = vmatpush1.msra.mxu0 0.0
        %652 = vmatprep.subr.mxu0 0.0
        %653 = vmatpush1.msra.mxu0 0.0
        %654 = vmatprep.subr.mxu0 0.0
        %655 = vmatpush1.msra.mxu0 0.0
        %656 = vmatprep.subr.mxu0 0.0
        %657 = vmatpush1.msra.mxu0 0.0
        %658 = vmatprep.subr.mxu0 0.0
        %659 = vmatpush1.msra.mxu0 0.0
        %660 = vmatprep.subr.mxu0 0.0
        %661 = vmatpush1.msra.mxu0 0.0
        %662 = vmatprep.subr.mxu0 0.0
        %663 = vmatpush1.msra.mxu0 0.0
        %664 = vmatprep.subr.mxu0 0.0
        %665 = vmatpush1.msra.mxu0 0.0
        %666 = vmatprep.subr.mxu0 0.0
        %667 = vmatpush1.msra.mxu0 0.0
        %668 = vmatprep.subr.mxu0 0.0
        %669 = vmatpush1.msra.mxu0 0.0
        %670 = vmatprep.subr.mxu0 0.0
        %671 = vmatpush1.msra.mxu0 0.0
        %672 = vmatprep.subr.mxu0 0.0
        %673 = vmatpush1.msra.mxu0 0.0
        %674 = vmatprep.subr.mxu0 0.0
        %675 = vmatpush1.msra.mxu0 0.0
        %676 = vmatprep.subr.mxu0 0.0
        %677 = vmatpush1.msra.mxu0 0.0
        %678 = vmatprep.subr.mxu0 0.0
        %679 = vmatpush1.msra.mxu0 0.0
        %680 = vmatprep.subr.mxu0 0.0
        %681 = vmatpush1.msra.mxu0 0.0
        %682 = vmatprep.subr.mxu0 0.0
        %683 = vmatpush1.msra.mxu0 0.0
        %684 = vmatprep.subr.mxu0 0.0
        %685 = vmatpush1.msra.mxu0 0.0
        %686 = vmatprep.subr.mxu0 0.0
        %687 = vmatpush1.msra.mxu0 0.0
        %688 = vmatprep.subr.mxu0 0.0
        %689 = vmatpush1.msra.mxu0 0.0
        %690 = vmatprep.subr.mxu0 0.0
        %691 = vmatpush1.msra.mxu0 0.0
        %692 = vmatprep.subr.mxu0 0.0
        %693 = vmatpush1.msra.mxu0 0.0
        %694 = vmatprep.subr.mxu0 0.0
        %695 = vmatpush1.msra.mxu0 0.0
        %696 = vmatprep.subr.mxu0 0.0
        %697 = vmatpush1.msra.mxu0 0.0
        %698 = vmatprep.subr.mxu0 0.0
        %699 = vmatpush1.msra.mxu0 0.0
        %700 = vmatprep.mubr.f32.mxu0 0.0
        %701 = vmatmul.mubr.f32.gmra.mrb[0].mxu0 %v359
        %v702 = vpop.f32.mrb[0].mxu0
        %v703 = vadd.f32 0.0, %v702
        %v704 = vpop.f32.mrb[0].mxu0
        %705 = vmatprep.mubr.f32.mxu0 0.0
        %706 = vmatmul.mubr.f32.gmra.mrb[0].mxu0 %v361
        %v707 = vpop.f32.mrb[0].mxu0
        %v708 = vadd.f32 0.0, %v707
        %v709 = vpop.f32.mrb[0].mxu0
        %710 = vdwg.mxu0
        %711 = vmatprep.subr.mxu0 0.0
        %712 = vmatpush1.msra.mxu0 %v627
        %713 = vmatprep.subr.mxu0 0.0
        %714 = vmatpush1.msra.mxu0 %v628
        %715 = vmatprep.subr.mxu0 0.0
        %716 = vmatpush1.msra.mxu0 %v629
        %717 = vmatprep.subr.mxu0 0.0
        %718 = vmatpush1.msra.mxu0 %v630
        %719 = vmatprep.subr.mxu0 0.0
        %720 = vmatpush1.msra.mxu0 0.0
        %721 = vmatprep.subr.mxu0 0.0
        %722 = vmatpush1.msra.mxu0 0.0
        %723 = vmatprep.subr.mxu0 0.0
        %724 = vmatpush1.msra.mxu0 0.0
        %725 = vmatprep.subr.mxu0 0.0
        %726 = vmatpush1.msra.mxu0 0.0
        %727 = vmatprep.subr.mxu0 0.0
        %728 = vmatpush1.msra.mxu0 0.0
        %729 = vmatprep.subr.mxu0 0.0
        %730 = vmatpush1.msra.mxu0 0.0
        %731 = vmatprep.subr.mxu0 0.0
        %732 = vmatpush1.msra.mxu0 0.0
        %733 = vmatprep.subr.mxu0 0.0
        %734 = vmatpush1.msra.mxu0 0.0
        %735 = vmatprep.subr.mxu0 0.0
        %736 = vmatpush1.msra.mxu0 0.0
        %737 = vmatprep.subr.mxu0 0.0
        %738 = vmatpush1.msra.mxu0 0.0
        %739 = vmatprep.subr.mxu0 0.0
        %740 = vmatpush1.msra.mxu0 0.0
        %741 = vmatprep.subr.mxu0 0.0
        %742 = vmatpush1.msra.mxu0 0.0
        %743 = vmatprep.subr.mxu0 0.0
        %744 = vmatpush1.msra.mxu0 0.0
        %745 = vmatprep.subr.mxu0 0.0
        %746 = vmatpush1.msra.mxu0 0.0
        %747 = vmatprep.subr.mxu0 0.0
        %748 = vmatpush1.msra.mxu0 0.0
        %749 = vmatprep.subr.mxu0 0.0
        %750 = vmatpush1.msra.mxu0 0.0
        %751 = vmatprep.subr.mxu0 0.0
        %752 = vmatpush1.msra.mxu0 0.0
        %753 = vmatprep.subr.mxu0 0.0
        %754 = vmatpush1.msra.mxu0 0.0
        %755 = vmatprep.subr.mxu0 0.0
        %756 = vmatpush1.msra.mxu0 0.0
        %757 = vmatprep.subr.mxu0 0.0
        %758 = vmatpush1.msra.mxu0 0.0
        %759 = vmatprep.subr.mxu0 0.0
        %760 = vmatpush1.msra.mxu0 0.0
        %761 = vmatprep.subr.mxu0 0.0
        %762 = vmatpush1.msra.mxu0 0.0
        %763 = vmatprep.subr.mxu0 0.0
        %764 = vmatpush1.msra.mxu0 0.0
        %765 = vmatprep.subr.mxu0 0.0
        %766 = vmatpush1.msra.mxu0 0.0
        %767 = vmatprep.subr.mxu0 0.0
        %768 = vmatpush1.msra.mxu0 0.0
        %769 = vmatprep.subr.mxu0 0.0
        %770 = vmatpush1.msra.mxu0 0.0
        %771 = vmatprep.subr.mxu0 0.0
        %772 = vmatpush1.msra.mxu0 0.0
        %773 = vmatprep.subr.mxu0 0.0
        %774 = vmatpush1.msra.mxu0 0.0
        %775 = vmatprep.mubr.f32.mxu0 0.0
        %776 = vmatmul.mubr.f32.gmra.mrb[0].mxu0 %v438
        %v777 = vpop.f32.mrb[0].mxu0
        %v778 = vadd.f32 %v703, %v777
        %v779 = vpop.f32.mrb[0].mxu0
        %780 = vmatprep.mubr.f32.mxu0 0.0
        %781 = vmatmul.mubr.f32.gmra.mrb[0].mxu0 %v440
        %v782 = vpop.f32.mrb[0].mxu0
        %v783 = vadd.f32 %v708, %v782
        %v784 = vpop.f32.mrb[0].mxu0
        %785 = vdwg.mxu0
        %s786 = scalar_lea.vmem [#allocation6], 64
        %v787 = vld [vmem:[%s786] sm:$0xff]
        %v788 = vld [vmem:[%s786 + $0x8] sm:$0xff]
        %v789 = vld [vmem:[%s786 + $0x10] sm:$0xff]
        %v790 = vld [vmem:[%s786 + $0x18] sm:$0xff]
        %791 = vmatprep.subr.mxu0 0.0
        %792 = vmatpush1.msra.mxu0 %v787
        %793 = vmatprep.subr.mxu0 0.0
        %794 = vmatpush1.msra.mxu0 %v788
        %795 = vmatprep.subr.mxu0 0.0
        %796 = vmatpush1.msra.mxu0 %v789
        %797 = vmatprep.subr.mxu0 0.0
        %798 = vmatpush1.msra.mxu0 %v790
        %799 = vmatprep.subr.mxu0 0.0
        %800 = vmatpush1.msra.mxu0 0.0
        %801 = vmatprep.subr.mxu0 0.0
        %802 = vmatpush1.msra.mxu0 0.0
        %803 = vmatprep.subr.mxu0 0.0
        %804 = vmatpush1.msra.mxu0 0.0
        %805 = vmatprep.subr.mxu0 0.0
        %806 = vmatpush1.msra.mxu0 0.0
        %807 = vmatprep.subr.mxu0 0.0
        %808 = vmatpush1.msra.mxu0 0.0
        %809 = vmatprep.subr.mxu0 0.0
        %810 = vmatpush1.msra.mxu0 0.0
        %811 = vmatprep.subr.mxu0 0.0
        %812 = vmatpush1.msra.mxu0 0.0
        %813 = vmatprep.subr.mxu0 0.0
        %814 = vmatpush1.msra.mxu0 0.0
        %815 = vmatprep.subr.mxu0 0.0
        %816 = vmatpush1.msra.mxu0 0.0
        %817 = vmatprep.subr.mxu0 0.0
        %818 = vmatpush1.msra.mxu0 0.0
        %819 = vmatprep.subr.mxu0 0.0
        %820 = vmatpush1.msra.mxu0 0.0
        %821 = vmatprep.subr.mxu0 0.0
        %822 = vmatpush1.msra.mxu0 0.0
        %823 = vmatprep.subr.mxu0 0.0
        %824 = vmatpush1.msra.mxu0 0.0
        %825 = vmatprep.subr.mxu0 0.0
        %826 = vmatpush1.msra.mxu0 0.0
        %827 = vmatprep.subr.mxu0 0.0
        %828 = vmatpush1.msra.mxu0 0.0
        %829 = vmatprep.subr.mxu0 0.0
        %830 = vmatpush1.msra.mxu0 0.0
        %831 = vmatprep.subr.mxu0 0.0
        %832 = vmatpush1.msra.mxu0 0.0
        %833 = vmatprep.subr.mxu0 0.0
        %834 = vmatpush1.msra.mxu0 0.0
        %835 = vmatprep.subr.mxu0 0.0
        %836 = vmatpush1.msra.mxu0 0.0
        %837 = vmatprep.subr.mxu0 0.0
        %838 = vmatpush1.msra.mxu0 0.0
        %839 = vmatprep.subr.mxu0 0.0
        %840 = vmatpush1.msra.mxu0 0.0
        %841 = vmatprep.subr.mxu0 0.0
        %842 = vmatpush1.msra.mxu0 0.0
        %843 = vmatprep.subr.mxu0 0.0
        %844 = vmatpush1.msra.mxu0 0.0
        %845 = vmatprep.subr.mxu0 0.0
        %846 = vmatpush1.msra.mxu0 0.0
        %847 = vmatprep.subr.mxu0 0.0
        %848 = vmatpush1.msra.mxu0 0.0
        %849 = vmatprep.subr.mxu0 0.0
        %850 = vmatpush1.msra.mxu0 0.0
        %851 = vmatprep.subr.mxu0 0.0
        %852 = vmatpush1.msra.mxu0 0.0
        %853 = vmatprep.subr.mxu0 0.0
        %854 = vmatpush1.msra.mxu0 0.0
        %855 = vmatprep.mubr.f32.mxu0 0.0
        %856 = vmatmul.mubr.f32.gmra.mrb[0].mxu0 %v526
        %v857 = vpop.f32.mrb[0].mxu0
        %v858 = vadd.f32 0.0, %v857
        %v859 = vpop.f32.mrb[0].mxu0
        %860 = vmatprep.mubr.f32.mxu0 0.0
        %861 = vmatmul.mubr.f32.gmra.mrb[0].mxu0 %v528
        %v862 = vpop.f32.mrb[0].mxu0
        %v863 = vadd.f32 0.0, %v862
        %v864 = vpop.f32.mrb[0].mxu0
        %865 = vdwg.mxu0
        %v866 = vadd.f32 %v778, %v858
        %v867 = vadd.f32 %v783, %v863
        %s868 = scalar_lea.vmem [#allocation6], 96
        %v869 = vld [vmem:[%s868] sm:$0xff]
        %v870 = vld [vmem:[%s868 + $0x8] sm:$0xff]
        %v871 = vld [vmem:[%s868 + $0x10] sm:$0xff]
        %v872 = vld [vmem:[%s868 + $0x18] sm:$0xff]
        %vm873 = vcmask 1044480
        %v874 = vrot.slane %v341, 3
        %v875 = vrot.slane %v342, 3
        %v876 = vsel %vm873, %v874, %v875
        %v877 = vsel %vm358, %v876, 0
        %v879 = vsel %vm358, %v875, 0
        %881 = vmatprep.subr.mxu0 0.0
        %882 = vmatpush1.msra.mxu0 %v869
        %883 = vmatprep.subr.mxu0 0.0
        %884 = vmatpush1.msra.mxu0 %v870
        %885 = vmatprep.subr.mxu0 0.0
        %886 = vmatpush1.msra.mxu0 %v871
        %887 = vmatprep.subr.mxu0 0.0
        %888 = vmatpush1.msra.mxu0 %v872
        %889 = vmatprep.subr.mxu0 0.0
        %890 = vmatpush1.msra.mxu0 0.0
        %891 = vmatprep.subr.mxu0 0.0
        %892 = vmatpush1.msra.mxu0 0.0
        %893 = vmatprep.subr.mxu0 0.0
        %894 = vmatpush1.msra.mxu0 0.0
        %895 = vmatprep.subr.mxu0 0.0
        %896 = vmatpush1.msra.mxu0 0.0
        %897 = vmatprep.subr.mxu0 0.0
        %898 = vmatpush1.msra.mxu0 0.0
        %899 = vmatprep.subr.mxu0 0.0
        %900 = vmatpush1.msra.mxu0 0.0
        %901 = vmatprep.subr.mxu0 0.0
        %902 = vmatpush1.msra.mxu0 0.0
        %903 = vmatprep.subr.mxu0 0.0
        %904 = vmatpush1.msra.mxu0 0.0
        %905 = vmatprep.subr.mxu0 0.0
        %906 = vmatpush1.msra.mxu0 0.0
        %907 = vmatprep.subr.mxu0 0.0
        %908 = vmatpush1.msra.mxu0 0.0
        %909 = vmatprep.subr.mxu0 0.0
        %910 = vmatpush1.msra.mxu0 0.0
        %911 = vmatprep.subr.mxu0 0.0
        %912 = vmatpush1.msra.mxu0 0.0
        %913 = vmatprep.subr.mxu0 0.0
        %914 = vmatpush1.msra.mxu0 0.0
        %915 = vmatprep.subr.mxu0 0.0
        %916 = vmatpush1.msra.mxu0 0.0
        %917 = vmatprep.subr.mxu0 0.0
        %918 = vmatpush1.msra.mxu0 0.0
        %919 = vmatprep.subr.mxu0 0.0
        %920 = vmatpush1.msra.mxu0 0.0
        %921 = vmatprep.subr.mxu0 0.0
        %922 = vmatpush1.msra.mxu0 0.0
        %923 = vmatprep.subr.mxu0 0.0
        %924 = vmatpush1.msra.mxu0 0.0
        %925 = vmatprep.subr.mxu0 0.0
        %926 = vmatpush1.msra.mxu0 0.0
        %927 = vmatprep.subr.mxu0 0.0
        %928 = vmatpush1.msra.mxu0 0.0
        %929 = vmatprep.subr.mxu0 0.0
        %930 = vmatpush1.msra.mxu0 0.0
        %931 = vmatprep.subr.mxu0 0.0
        %932 = vmatpush1.msra.mxu0 0.0
        %933 = vmatprep.subr.mxu0 0.0
        %934 = vmatpush1.msra.mxu0 0.0
        %935 = vmatprep.subr.mxu0 0.0
        %936 = vmatpush1.msra.mxu0 0.0
        %937 = vmatprep.subr.mxu0 0.0
        %938 = vmatpush1.msra.mxu0 0.0
        %939 = vmatprep.subr.mxu0 0.0
        %940 = vmatpush1.msra.mxu0 0.0
        %941 = vmatprep.subr.mxu0 0.0
        %942 = vmatpush1.msra.mxu0 0.0
        %943 = vmatprep.subr.mxu0 0.0
        %944 = vmatpush1.msra.mxu0 0.0
        %945 = vmatprep.mubr.f32.mxu0 0.0
        %946 = vmatmul.mubr.f32.gmra.mrb[0].mxu0 %v877
        %v947 = vpop.f32.mrb[0].mxu0
        %v948 = vadd.f32 0.0, %v947
        %v949 = vpop.f32.mrb[0].mxu0
        %950 = vmatprep.mubr.f32.mxu0 0.0
        %951 = vmatmul.mubr.f32.gmra.mrb[0].mxu0 %v879
        %v952 = vpop.f32.mrb[0].mxu0
        %v953 = vadd.f32 0.0, %v952
        %v954 = vpop.f32.mrb[0].mxu0
        %955 = vdwg.mxu0
        %v956 = vadd.f32 %v866, %v948
        %v957 = vadd.f32 %v867, %v953
        %v958 = vld [vmem:[%s4] sm:$0x1]
        %v960 = vlaneseq
        %v961 = vshrl.u32 %v960, 7
        %v962 = vsub.s32 0, %v961
        %v963 = vrot.slane %v958, %v962
        %v965 = vadd.f32 %v956, %v963
        %v966 = vadd.f32 %v957, %v963
        %v967 = vmax.f32 %v965, 0.0
        %v968 = vmax.f32 %v966, 0.0
        %v969 = vsel %vm873, %v968, -inf
        %v970 = vmax.f32 %v967, %v969
        %v971 = vrot.slane %v970, 4
        %v972 = vmax.f32 %v970, %v971
        %v973 = vrot.slane %v972, 2
        %v974 = vmax.f32 %v972, %v973
        %v975 = vrot.slane %v974, 1
        %v976 = vmax.f32 %v974, %v975
        %977 = vst [vmem:[%s340 + $0x1] sm:$0x1] %v976
        %v978 = vld [vmem:[#allocation7] sm:$0xff]
        %v979 = vld [vmem:[#allocation7 + $0x8] sm:$0xff]
        %v980 = vld [vmem:[#allocation7 + $0x10] sm:$0xff]
        %v981 = vld [vmem:[#allocation7 + $0x18] sm:$0xff]
        %s982 = scalar_lea.vmem [#allocation7], 32
        %v983 = vld [vmem:[%s982] sm:$0xff]
        %v984 = vld [vmem:[%s982 + $0x8] sm:$0xff]
        %v985 = vld [vmem:[%s982 + $0x10] sm:$0xff]
        %v986 = vld [vmem:[%s982 + $0x18] sm:$0xff]
        %987 = vmatprep.subr.mxu0 0.0
        %988 = vmatpush1.msra.mxu0 %v983
        %989 = vmatprep.subr.mxu0 0.0
        %990 = vmatpush1.msra.mxu0 %v984
        %991 = vmatprep.subr.mxu0 0.0
        %992 = vmatpush1.msra.mxu0 %v985
        %993 = vmatprep.subr.mxu0 0.0
        %994 = vmatpush1.msra.mxu0 %v986
        %995 = vmatprep.subr.mxu0 0.0
        %996 = vmatpush1.msra.mxu0 0.0
        %997 = vmatprep.subr.mxu0 0.0
        %998 = vmatpush1.msra.mxu0 0.0
        %999 = vmatprep.subr.mxu0 0.0
        %1000 = vmatpush1.msra.mxu0 0.0
        %1001 = vmatprep.subr.mxu0 0.0
        %1002 = vmatpush1.msra.mxu0 0.0
        %1003 = vmatprep.subr.mxu0 0.0
        %1004 = vmatpush1.msra.mxu0 0.0
        %1005 = vmatprep.subr.mxu0 0.0
        %1006 = vmatpush1.msra.mxu0 0.0
        %1007 = vmatprep.subr.mxu0 0.0
        %1008 = vmatpush1.msra.mxu0 0.0
        %1009 = vmatprep.subr.mxu0 0.0
        %1010 = vmatpush1.msra.mxu0 0.0
        %1011 = vmatprep.subr.mxu0 0.0
        %1012 = vmatpush1.msra.mxu0 0.0
        %1013 = vmatprep.subr.mxu0 0.0
        %1014 = vmatpush1.msra.mxu0 0.0
        %1015 = vmatprep.subr.mxu0 0.0
        %1016 = vmatpush1.msra.mxu0 0.0
        %1017 = vmatprep.subr.mxu0 0.0
        %1018 = vmatpush1.msra.mxu0 0.0
        %1019 = vmatprep.subr.mxu0 0.0
        %1020 = vmatpush1.msra.mxu0 0.0
        %1021 = vmatprep.subr.mxu0 0.0
        %1022 = vmatpush1.msra.mxu0 0.0
        %1023 = vmatprep.subr.mxu0 0.0
        %1024 = vmatpush1.msra.mxu0 0.0
        %1025 = vmatprep.subr.mxu0 0.0
        %1026 = vmatpush1.msra.mxu0 0.0
        %1027 = vmatprep.subr.mxu0 0.0
        %1028 = vmatpush1.msra.mxu0 0.0
        %1029 = vmatprep.subr.mxu0 0.0
        %1030 = vmatpush1.msra.mxu0 0.0
        %1031 = vmatprep.subr.mxu0 0.0
        %1032 = vmatpush1.msra.mxu0 0.0
        %1033 = vmatprep.subr.mxu0 0.0
        %1034 = vmatpush1.msra.mxu0 0.0
        %1035 = vmatprep.subr.mxu0 0.0
        %1036 = vmatpush1.msra.mxu0 0.0
        %1037 = vmatprep.subr.mxu0 0.0
        %1038 = vmatpush1.msra.mxu0 0.0
        %1039 = vmatprep.subr.mxu0 0.0
        %1040 = vmatpush1.msra.mxu0 0.0
        %1041 = vmatprep.subr.mxu0 0.0
        %1042 = vmatpush1.msra.mxu0 0.0
        %1043 = vmatprep.subr.mxu0 0.0
        %1044 = vmatpush1.msra.mxu0 0.0
        %1045 = vmatprep.subr.mxu0 0.0
        %1046 = vmatpush1.msra.mxu0 0.0
        %1047 = vmatprep.subr.mxu0 0.0
        %1048 = vmatpush1.msra.mxu0 0.0
        %1049 = vmatprep.subr.mxu0 0.0
        %1050 = vmatpush1.msra.mxu0 0.0
        %1051 = vmatprep.mubr.f32.mxu0 0.0
        %1052 = vmatmul.mubr.f32.gmra.mrb[0].mxu0 %v359
        %v1053 = vpop.f32.mrb[0].mxu0
        %v1054 = vadd.f32 0.0, %v1053
        %v1055 = vpop.f32.mrb[0].mxu0
        %1056 = vmatprep.mubr.f32.mxu0 0.0
        %1057 = vmatmul.mubr.f32.gmra.mrb[0].mxu0 %v361
        %v1058 = vpop.f32.mrb[0].mxu0
        %v1059 = vadd.f32 0.0, %v1058
        %v1060 = vpop.f32.mrb[0].mxu0
        %1061 = vdwg.mxu0
        %1062 = vmatprep.subr.mxu0 0.0
        %1063 = vmatpush1.msra.mxu0 %v978
        %1064 = vmatprep.subr.mxu0 0.0
        %1065 = vmatpush1.msra.mxu0 %v979
        %1066 = vmatprep.subr.mxu0 0.0
        %1067 = vmatpush1.msra.mxu0 %v980
        %1068 = vmatprep.subr.mxu0 0.0
        %1069 = vmatpush1.msra.mxu0 %v981
        %1070 = vmatprep.subr.mxu0 0.0
        %1071 = vmatpush1.msra.mxu0 0.0
        %1072 = vmatprep.subr.mxu0 0.0
        %1073 = vmatpush1.msra.mxu0 0.0
        %1074 = vmatprep.subr.mxu0 0.0
        %1075 = vmatpush1.msra.mxu0 0.0
        %1076 = vmatprep.subr.mxu0 0.0
        %1077 = vmatpush1.msra.mxu0 0.0
        %1078 = vmatprep.subr.mxu0 0.0
        %1079 = vmatpush1.msra.mxu0 0.0
        %1080 = vmatprep.subr.mxu0 0.0
        %1081 = vmatpush1.msra.mxu0 0.0
        %1082 = vmatprep.subr.mxu0 0.0
        %1083 = vmatpush1.msra.mxu0 0.0
        %1084 = vmatprep.subr.mxu0 0.0
        %1085 = vmatpush1.msra.mxu0 0.0
        %1086 = vmatprep.subr.mxu0 0.0
        %1087 = vmatpush1.msra.mxu0 0.0
        %1088 = vmatprep.subr.mxu0 0.0
        %1089 = vmatpush1.msra.mxu0 0.0
        %1090 = vmatprep.subr.mxu0 0.0
        %1091 = vmatpush1.msra.mxu0 0.0
        %1092 = vmatprep.subr.mxu0 0.0
        %1093 = vmatpush1.msra.mxu0 0.0
        %1094 = vmatprep.subr.mxu0 0.0
        %1095 = vmatpush1.msra.mxu0 0.0
        %1096 = vmatprep.subr.mxu0 0.0
        %1097 = vmatpush1.msra.mxu0 0.0
        %1098 = vmatprep.subr.mxu0 0.0
        %1099 = vmatpush1.msra.mxu0 0.0
        %1100 = vmatprep.subr.mxu0 0.0
        %1101 = vmatpush1.msra.mxu0 0.0
        %1102 = vmatprep.subr.mxu0 0.0
        %1103 = vmatpush1.msra.mxu0 0.0
        %1104 = vmatprep.subr.mxu0 0.0
        %1105 = vmatpush1.msra.mxu0 0.0
        %1106 = vmatprep.subr.mxu0 0.0
        %1107 = vmatpush1.msra.mxu0 0.0
        %1108 = vmatprep.subr.mxu0 0.0
        %1109 = vmatpush1.msra.mxu0 0.0
        %1110 = vmatprep.subr.mxu0 0.0
        %1111 = vmatpush1.msra.mxu0 0.0
        %1112 = vmatprep.subr.mxu0 0.0
        %1113 = vmatpush1.msra.mxu0 0.0
        %1114 = vmatprep.subr.mxu0 0.0
        %1115 = vmatpush1.msra.mxu0 0.0
        %1116 = vmatprep.subr.mxu0 0.0
        %1117 = vmatpush1.msra.mxu0 0.0
        %1118 = vmatprep.subr.mxu0 0.0
        %1119 = vmatpush1.msra.mxu0 0.0
        %1120 = vmatprep.subr.mxu0 0.0
        %1121 = vmatpush1.msra.mxu0 0.0
        %1122 = vmatprep.subr.mxu0 0.0
        %1123 = vmatpush1.msra.mxu0 0.0
        %1124 = vmatprep.subr.mxu0 0.0
        %1125 = vmatpush1.msra.mxu0 0.0
        %1126 = vmatprep.mubr.f32.mxu0 0.0
        %1127 = vmatmul.mubr.f32.gmra.mrb[0].mxu0 %v438
        %v1128 = vpop.f32.mrb[0].mxu0
        %v1129 = vadd.f32 %v1054, %v1128
        %v1130 = vpop.f32.mrb[0].mxu0
        %1131 = vmatprep.mubr.f32.mxu0 0.0
        %1132 = vmatmul.mubr.f32.gmra.mrb[0].mxu0 %v440
        %v1133 = vpop.f32.mrb[0].mxu0
        %v1134 = vadd.f32 %v1059, %v1133
        %v1135 = vpop.f32.mrb[0].mxu0
        %1136 = vdwg.mxu0
        %s1137 = scalar_lea.vmem [#allocation7], 64
        %v1138 = vld [vmem:[%s1137] sm:$0xff]
        %v1139 = vld [vmem:[%s1137 + $0x8] sm:$0xff]
        %v1140 = vld [vmem:[%s1137 + $0x10] sm:$0xff]
        %v1141 = vld [vmem:[%s1137 + $0x18] sm:$0xff]
        %1142 = vmatprep.subr.mxu0 0.0
        %1143 = vmatpush1.msra.mxu0 %v1138
        %1144 = vmatprep.subr.mxu0 0.0
        %1145 = vmatpush1.msra.mxu0 %v1139
        %1146 = vmatprep.subr.mxu0 0.0
        %1147 = vmatpush1.msra.mxu0 %v1140
        %1148 = vmatprep.subr.mxu0 0.0
        %1149 = vmatpush1.msra.mxu0 %v1141
        %1150 = vmatprep.subr.mxu0 0.0
        %1151 = vmatpush1.msra.mxu0 0.0
        %1152 = vmatprep.subr.mxu0 0.0
        %1153 = vmatpush1.msra.mxu0 0.0
        %1154 = vmatprep.subr.mxu0 0.0
        %1155 = vmatpush1.msra.mxu0 0.0
        %1156 = vmatprep.subr.mxu0 0.0
        %1157 = vmatpush1.msra.mxu0 0.0
        %1158 = vmatprep.subr.mxu0 0.0
        %1159 = vmatpush1.msra.mxu0 0.0
        %1160 = vmatprep.subr.mxu0 0.0
        %1161 = vmatpush1.msra.mxu0 0.0
        %1162 = vmatprep.subr.mxu0 0.0
        %1163 = vmatpush1.msra.mxu0 0.0
        %1164 = vmatprep.subr.mxu0 0.0
        %1165 = vmatpush1.msra.mxu0 0.0
        %1166 = vmatprep.subr.mxu0 0.0
        %1167 = vmatpush1.msra.mxu0 0.0
        %1168 = vmatprep.subr.mxu0 0.0
        %1169 = vmatpush1.msra.mxu0 0.0
        %1170 = vmatprep.subr.mxu0 0.0
        %1171 = vmatpush1.msra.mxu0 0.0
        %1172 = vmatprep.subr.mxu0 0.0
        %1173 = vmatpush1.msra.mxu0 0.0
        %1174 = vmatprep.subr.mxu0 0.0
        %1175 = vmatpush1.msra.mxu0 0.0
        %1176 = vmatprep.subr.mxu0 0.0
        %1177 = vmatpush1.msra.mxu0 0.0
        %1178 = vmatprep.subr.mxu0 0.0
        %1179 = vmatpush1.msra.mxu0 0.0
        %1180 = vmatprep.subr.mxu0 0.0
        %1181 = vmatpush1.msra.mxu0 0.0
        %1182 = vmatprep.subr.mxu0 0.0
        %1183 = vmatpush1.msra.mxu0 0.0
        %1184 = vmatprep.subr.mxu0 0.0
        %1185 = vmatpush1.msra.mxu0 0.0
        %1186 = vmatprep.subr.mxu0 0.0
        %1187 = vmatpush1.msra.mxu0 0.0
        %1188 = vmatprep.subr.mxu0 0.0
        %1189 = vmatpush1.msra.mxu0 0.0
        %1190 = vmatprep.subr.mxu0 0.0
        %1191 = vmatpush1.msra.mxu0 0.0
        %1192 = vmatprep.subr.mxu0 0.0
        %1193 = vmatpush1.msra.mxu0 0.0
        %1194 = vmatprep.subr.mxu0 0.0
        %1195 = vmatpush1.msra.mxu0 0.0
        %1196 = vmatprep.subr.mxu0 0.0
        %1197 = vmatpush1.msra.mxu0 0.0
        %1198 = vmatprep.subr.mxu0 0.0
        %1199 = vmatpush1.msra.mxu0 0.0
        %1200 = vmatprep.subr.mxu0 0.0
        %1201 = vmatpush1.msra.mxu0 0.0
        %1202 = vmatprep.subr.mxu0 0.0
        %1203 = vmatpush1.msra.mxu0 0.0
        %1204 = vmatprep.subr.mxu0 0.0
        %1205 = vmatpush1.msra.mxu0 0.0
        %1206 = vmatprep.mubr.f32.mxu0 0.0
        %1207 = vmatmul.mubr.f32.gmra.mrb[0].mxu0 %v526
        %v1208 = vpop.f32.mrb[0].mxu0
        %v1209 = vadd.f32 0.0, %v1208
        %v1210 = vpop.f32.mrb[0].mxu0
        %1211 = vmatprep.mubr.f32.mxu0 0.0
        %1212 = vmatmul.mubr.f32.gmra.mrb[0].mxu0 %v528
        %v1213 = vpop.f32.mrb[0].mxu0
        %v1214 = vadd.f32 0.0, %v1213
        %v1215 = vpop.f32.mrb[0].mxu0
        %1216 = vdwg.mxu0
        %v1217 = vadd.f32 %v1129, %v1209
        %v1218 = vadd.f32 %v1134, %v1214
        %s1219 = scalar_lea.vmem [#allocation7], 96
        %v1220 = vld [vmem:[%s1219] sm:$0xff]
        %v1221 = vld [vmem:[%s1219 + $0x8] sm:$0xff]
        %v1222 = vld [vmem:[%s1219 + $0x10] sm:$0xff]
        %v1223 = vld [vmem:[%s1219 + $0x18] sm:$0xff]
        %1224 = vmatprep.subr.mxu0 0.0
        %1225 = vmatpush1.msra.mxu0 %v1220
        %1226 = vmatprep.subr.mxu0 0.0
        %1227 = vmatpush1.msra.mxu0 %v1221
        %1228 = vmatprep.subr.mxu0 0.0
        %1229 = vmatpush1.msra.mxu0 %v1222
        %1230 = vmatprep.subr.mxu0 0.0
        %1231 = vmatpush1.msra.mxu0 %v1223
        %1232 = vmatprep.subr.mxu0 0.0
        %1233 = vmatpush1.msra.mxu0 0.0
        %1234 = vmatprep.subr.mxu0 0.0
        %1235 = vmatpush1.msra.mxu0 0.0
        %1236 = vmatprep.subr.mxu0 0.0
        %1237 = vmatpush1.msra.mxu0 0.0
        %1238 = vmatprep.subr.mxu0 0.0
        %1239 = vmatpush1.msra.mxu0 0.0
        %1240 = vmatprep.subr.mxu0 0.0
        %1241 = vmatpush1.msra.mxu0 0.0
        %1242 = vmatprep.subr.mxu0 0.0
        %1243 = vmatpush1.msra.mxu0 0.0
        %1244 = vmatprep.subr.mxu0 0.0
        %1245 = vmatpush1.msra.mxu0 0.0
        %1246 = vmatprep.subr.mxu0 0.0
        %1247 = vmatpush1.msra.mxu0 0.0
        %1248 = vmatprep.subr.mxu0 0.0
        %1249 = vmatpush1.msra.mxu0 0.0
        %1250 = vmatprep.subr.mxu0 0.0
        %1251 = vmatpush1.msra.mxu0 0.0
        %1252 = vmatprep.subr.mxu0 0.0
        %1253 = vmatpush1.msra.mxu0 0.0
        %1254 = vmatprep.subr.mxu0 0.0
        %1255 = vmatpush1.msra.mxu0 0.0
        %1256 = vmatprep.subr.mxu0 0.0
        %1257 = vmatpush1.msra.mxu0 0.0
        %1258 = vmatprep.subr.mxu0 0.0
        %1259 = vmatpush1.msra.mxu0 0.0
        %1260 = vmatprep.subr.mxu0 0.0
        %1261 = vmatpush1.msra.mxu0 0.0
        %1262 = vmatprep.subr.mxu0 0.0
        %1263 = vmatpush1.msra.mxu0 0.0
        %1264 = vmatprep.subr.mxu0 0.0
        %1265 = vmatpush1.msra.mxu0 0.0
        %1266 = vmatprep.subr.mxu0 0.0
        %1267 = vmatpush1.msra.mxu0 0.0
        %1268 = vmatprep.subr.mxu0 0.0
        %1269 = vmatpush1.msra.mxu0 0.0
        %1270 = vmatprep.subr.mxu0 0.0
        %1271 = vmatpush1.msra.mxu0 0.0
        %1272 = vmatprep.subr.mxu0 0.0
        %1273 = vmatpush1.msra.mxu0 0.0
        %1274 = vmatprep.subr.mxu0 0.0
        %1275 = vmatpush1.msra.mxu0 0.0
        %1276 = vmatprep.subr.mxu0 0.0
        %1277 = vmatpush1.msra.mxu0 0.0
        %1278 = vmatprep.subr.mxu0 0.0
        %1279 = vmatpush1.msra.mxu0 0.0
        %1280 = vmatprep.subr.mxu0 0.0
        %1281 = vmatpush1.msra.mxu0 0.0
        %1282 = vmatprep.subr.mxu0 0.0
        %1283 = vmatpush1.msra.mxu0 0.0
        %1284 = vmatprep.subr.mxu0 0.0
        %1285 = vmatpush1.msra.mxu0 0.0
        %1286 = vmatprep.subr.mxu0 0.0
        %1287 = vmatpush1.msra.mxu0 0.0
        %1288 = vmatprep.mubr.f32.mxu0 0.0
        %1289 = vmatmul.mubr.f32.gmra.mrb[0].mxu0 %v877
        %v1290 = vpop.f32.mrb[0].mxu0
        %v1291 = vadd.f32 0.0, %v1290
        %v1292 = vpop.f32.mrb[0].mxu0
        %1293 = vmatprep.mubr.f32.mxu0 0.0
        %1294 = vmatmul.mubr.f32.gmra.mrb[0].mxu0 %v879
        %v1295 = vpop.f32.mrb[0].mxu0
        %v1296 = vadd.f32 0.0, %v1295
        %v1297 = vpop.f32.mrb[0].mxu0
        %1298 = vdwg.mxu0
        %v1299 = vadd.f32 %v1217, %v1291
        %v1300 = vadd.f32 %v1218, %v1296
        %s1301 = scalar_lea.vmem [#allocation7], 128
        %v1302 = vld [vmem:[%s1301] sm:$0xff]
        %v1303 = vld [vmem:[%s1301 + $0x8] sm:$0xff]
        %v1304 = vld [vmem:[%s1301 + $0x10] sm:$0xff]
        %v1305 = vld [vmem:[%s1301 + $0x18] sm:$0xff]
        %vm1306 = vcmask 1043456
        %v1307 = vrot.slane %v341, 4
        %v1308 = vrot.slane %v342, 4
        %v1309 = vsel %vm1306, %v1307, %v1308
        %v1310 = vsel %vm358, %v1309, 0
        %v1312 = vsel %vm358, %v1308, 0
        %1314 = vmatprep.subr.mxu0 0.0
        %1315 = vmatpush1.msra.mxu0 %v1302
        %1316 = vmatprep.subr.mxu0 0.0
        %1317 = vmatpush1.msra.mxu0 %v1303
        %1318 = vmatprep.subr.mxu0 0.0
        %1319 = vmatpush1.msra.mxu0 %v1304
        %1320 = vmatprep.subr.mxu0 0.0
        %1321 = vmatpush1.msra.mxu0 %v1305
        %1322 = vmatprep.subr.mxu0 0.0
        %1323 = vmatpush1.msra.mxu0 0.0
        %1324 = vmatprep.subr.mxu0 0.0
        %1325 = vmatpush1.msra.mxu0 0.0
        %1326 = vmatprep.subr.mxu0 0.0
        %1327 = vmatpush1.msra.mxu0 0.0
        %1328 = vmatprep.subr.mxu0 0.0
        %1329 = vmatpush1.msra.mxu0 0.0
        %1330 = vmatprep.subr.mxu0 0.0
        %1331 = vmatpush1.msra.mxu0 0.0
        %1332 = vmatprep.subr.mxu0 0.0
        %1333 = vmatpush1.msra.mxu0 0.0
        %1334 = vmatprep.subr.mxu0 0.0
        %1335 = vmatpush1.msra.mxu0 0.0
        %1336 = vmatprep.subr.mxu0 0.0
        %1337 = vmatpush1.msra.mxu0 0.0
        %1338 = vmatprep.subr.mxu0 0.0
        %1339 = vmatpush1.msra.mxu0 0.0
        %1340 = vmatprep.subr.mxu0 0.0
        %1341 = vmatpush1.msra.mxu0 0.0
        %1342 = vmatprep.subr.mxu0 0.0
        %1343 = vmatpush1.msra.mxu0 0.0
        %1344 = vmatprep.subr.mxu0 0.0
        %1345 = vmatpush1.msra.mxu0 0.0
        %1346 = vmatprep.subr.mxu0 0.0
        %1347 = vmatpush1.msra.mxu0 0.0
        %1348 = vmatprep.subr.mxu0 0.0
        %1349 = vmatpush1.msra.mxu0 0.0
        %1350 = vmatprep.subr.mxu0 0.0
        %1351 = vmatpush1.msra.mxu0 0.0
        %1352 = vmatprep.subr.mxu0 0.0
        %1353 = vmatpush1.msra.mxu0 0.0
        %1354 = vmatprep.subr.mxu0 0.0
        %1355 = vmatpush1.msra.mxu0 0.0
        %1356 = vmatprep.subr.mxu0 0.0
        %1357 = vmatpush1.msra.mxu0 0.0
        %1358 = vmatprep.subr.mxu0 0.0
        %1359 = vmatpush1.msra.mxu0 0.0
        %1360 = vmatprep.subr.mxu0 0.0
        %1361 = vmatpush1.msra.mxu0 0.0
        %1362 = vmatprep.subr.mxu0 0.0
        %1363 = vmatpush1.msra.mxu0 0.0
        %1364 = vmatprep.subr.mxu0 0.0
        %1365 = vmatpush1.msra.mxu0 0.0
        %1366 = vmatprep.subr.mxu0 0.0
        %1367 = vmatpush1.msra.mxu0 0.0
        %1368 = vmatprep.subr.mxu0 0.0
        %1369 = vmatpush1.msra.mxu0 0.0
        %1370 = vmatprep.subr.mxu0 0.0
        %1371 = vmatpush1.msra.mxu0 0.0
        %1372 = vmatprep.subr.mxu0 0.0
        %1373 = vmatpush1.msra.mxu0 0.0
        %1374 = vmatprep.subr.mxu0 0.0
        %1375 = vmatpush1.msra.mxu0 0.0
        %1376 = vmatprep.subr.mxu0 0.0
        %1377 = vmatpush1.msra.mxu0 0.0
        %1378 = vmatprep.mubr.f32.mxu0 0.0
        %1379 = vmatmul.mubr.f32.gmra.mrb[0].mxu0 %v1310
        %v1380 = vpop.f32.mrb[0].mxu0
        %v1381 = vadd.f32 0.0, %v1380
        %v1382 = vpop.f32.mrb[0].mxu0
        %1383 = vmatprep.mubr.f32.mxu0 0.0
        %1384 = vmatmul.mubr.f32.gmra.mrb[0].mxu0 %v1312
        %v1385 = vpop.f32.mrb[0].mxu0
        %v1386 = vadd.f32 0.0, %v1385
        %v1387 = vpop.f32.mrb[0].mxu0
        %1388 = vdwg.mxu0
        %v1389 = vadd.f32 %v1299, %v1381
        %v1390 = vadd.f32 %v1300, %v1386
        %v1391 = vld [vmem:[%s6] sm:$0x1]
        %v1393 = vlaneseq
        %v1394 = vshrl.u32 %v1393, 7
        %v1395 = vsub.s32 0, %v1394
        %v1396 = vrot.slane %v1391, %v1395
        %v1398 = vadd.f32 %v1389, %v1396
        %v1399 = vadd.f32 %v1390, %v1396
        %v1400 = vmax.f32 %v1398, 0.0
        %v1401 = vmax.f32 %v1399, 0.0
        %v1402 = vsel %vm1306, %v1401, -inf
        %v1403 = vmax.f32 %v1400, %v1402
        %v1404 = vrot.slane %v1403, 4
        %v1405 = vmax.f32 %v1403, %v1404
        %v1406 = vrot.slane %v1405, 2
        %v1407 = vmax.f32 %v1405, %v1406
        %v1408 = vrot.slane %v1407, 1
        %v1409 = vmax.f32 %v1407, %v1408
        %1410 = vst [vmem:[%s340 + $0x2] sm:$0x1] %v1409
        %p1411 = scmp.lt.s32.totalorder %s23, 1
        %s1412 = scalar_select %p1411, %s23, 1
        %s1413 = smul.addr %s1412, 4
        %s1414 = scalar_lea.vmem %s7, %s1413
        // Predicated region
        $region65: #{tpu_custom_call.1} parent=47 // pred_check
          %p1415 = pneg %p193
        $region66: #{tpu_custom_call.1} parent=47 // pred_check_branch
          %1417 = sbr.rel (%p1415) target = $region68
        $region67: #{tpu_custom_call.1} parent=47 // pred_region
          _
        $region68: #{tpu_custom_call.1} parent=47 // pred_fallthru
          _
      $region48: #{tpu_custom_call.1} parent=5 // pred_fallthru
        _
      %p1418 = scmp.le.s32.totalorder 2, %s18
      // Predicated region
      $region69: #{tpu_custom_call.1} parent=5 // pred_check
        %p1419 = pneg %p1418
      $region70: #{tpu_custom_call.1} parent=5 // pred_check_branch
        %1421 = sbr.rel (%p1419) target = $region72
      $region71: #{tpu_custom_call.1} parent=5 // pred_region
        %s1422 = ssub.s32 %s18, 2
        // Predicated region
        $region73: #{tpu_custom_call.1} parent=71 // pred_check
          %p1423 = pneg %p199
        $region74: #{tpu_custom_call.1} parent=71 // pred_check_branch
          %1425 = sbr.rel (%p1423) target = $region76
        $region75: #{tpu_custom_call.1} parent=71 // pred_region
          %p1426 = scmp.lt.s32.totalorder %s24, 1
          %s1427 = scalar_select %p1426, %s24, 1
          %s1428 = smul.addr %s1427, 4
          %s1429 = scalar_lea.vmem %s7, %s1428
        $region76: #{tpu_custom_call.1} parent=71 // pred_fallthru
          _
      $region72: #{tpu_custom_call.1} parent=5 // pred_fallthru
        _
    $region6: #{tpu_custom_call.1} parent=1 // loop_footer
      %s22 = sadd.s32 1, %s18
    $region7: #{tpu_custom_call.1} parent=1 // loop_footer_branch
      %17 = sbr.rel target = $region3
    $region8: #{tpu_custom_call.1} parent=1 // loop_exit
      _
    %1430 = vsyncpa [#allocation3], 1
    %s1431 = scalar_lea.sflag [#allocation3], 1
    %1432 = vsyncpa %s1431, 1
    %1433 = vsyncpa [#allocation5], 1
    %1434 = vsyncpa [#allocation8], 1

</llo_original>
